<compile_context>
chip_gen: v5e
topology: v5e:2x2
jax: 0.10.0
libtpu: 0.0.40
codegen_flags: <defaults>
</compile_context>

<pallas_src>
import math

import jax
import jax.numpy as jnp
from jax.experimental import pallas as pl
from jax.experimental.pallas import tpu as pltpu


def _round_up(n, m):
    return ((n + m - 1) // m) * m


def _policy_mlp_kernel(x_ref, w1_ref, b1_ref, w2_ref, b2_ref, w3_ref, b3_ref,
                       o_ref):
    """Fused 3-layer MLP + softmax for one row-tile of the batch.

    Weights are bf16 (VMEM-resident across the batch grid); activations are
    cast to bf16 only at the MXU boundary, accumulation is f32.
    """
    x = x_ref[...].astype(jnp.bfloat16)

    # fc1 + ReLU
    h1 = jnp.dot(x, w1_ref[...], preferred_element_type=jnp.float32)
    h1 = jnp.maximum(h1 + b1_ref[...], 0.0)

    # fc2 + ReLU
    h2 = jnp.dot(h1.astype(jnp.bfloat16), w2_ref[...],
                 preferred_element_type=jnp.float32)
    h2 = jnp.maximum(h2 + b2_ref[...], 0.0)

    # fc3 (padded action columns carry a -1e30 bias -> exp underflows to 0)
    logits = jnp.dot(h2.astype(jnp.bfloat16), w3_ref[...],
                     preferred_element_type=jnp.float32)
    logits = logits + b3_ref[...]

    # Numerically stabilized softmax over the (padded) action dimension.
    # Exact per-row reciprocal so probabilities sum to 1 within f32 rounding.
    m = jnp.max(logits, axis=-1, keepdims=True)
    e = jnp.exp(logits - m)
    denom = jnp.sum(e, axis=-1, keepdims=True)
    inv = 1.0 / denom                      # (tile_m, 1) exact divide
    o_ref[...] = (e * inv).astype(o_ref.dtype)


def policy_network_forward(x, params):
    """Run the fused PolicyNetwork forward pass as a single Pallas kernel.

    Args:
      x: (batch, state_dim) float32.
      params: dict from init_params (bf16 weights in (in, out) layout,
              f32 biases as (1, out), action_dim lane-padded to 128).

    Returns:
      (batch, action_dim) float32 action probabilities (rows sum to 1).
    """
    batch, state_dim = x.shape
    w1, b1 = params["w1"], params["b1"]
    w2, b2 = params["w2"], params["b2"]
    w3, b3 = params["w3"], params["b3"]
    action_dim = params["action_dim"]

    h1_dim = w1.shape[1]
    h2_dim = w2.shape[1]
    padded_action = w3.shape[1]

    # Row tile: large enough to fill MXU rows at scale, shrunk for tiny
    # batches so we don't over-allocate (always a multiple of 8 sublanes).
    tile_m = min(256, _round_up(batch, 8))
    grid = (pl.cdiv(batch, tile_m),)

    const2d = lambda i: (0, 0)   # weights/biases: same block every step -> resident

    # Worst-case VMEM (tile_m=256): bf16 weights ~1.3 MiB + biases +
    # double-buffered x/out tiles + f32 h1/h2 temps  < 8 MiB.  32 MiB leaves
    # ample headroom on all of v5e/v6e/v7x.
    vmem_limit = 32 * 1024 * 1024

    out_padded = pl.pallas_call(
        _policy_mlp_kernel,
        out_shape=jax.ShapeDtypeStruct((batch, padded_action), jnp.float32),
        grid=grid,
        in_specs=[
            pl.BlockSpec((tile_m, state_dim), lambda i: (i, 0)),
            pl.BlockSpec((state_dim, h1_dim), const2d),
            pl.BlockSpec((1, h1_dim), const2d),
            pl.BlockSpec((h1_dim, h2_dim), const2d),
            pl.BlockSpec((1, h2_dim), const2d),
            pl.BlockSpec((h2_dim, padded_action), const2d),
            pl.BlockSpec((1, padded_action), const2d),
        ],
        out_specs=pl.BlockSpec((tile_m, padded_action), lambda i: (i, 0)),
        compiler_params=pltpu.CompilerParams(
            dimension_semantics=("parallel",),
            vmem_limit_bytes=vmem_limit,
        ),
    )(x, w1, b1, w2, b2, w3, b3)

    # Drop the lane-padding columns (they hold exactly-0 probability).
    return out_padded[:, :action_dim]


def init_params(key, state_dim, action_dim):
    """Xavier-uniform weights / zero biases, matching the PyTorch __init__.

    Weights are stored bf16 in (in, out) layout; action_dim is lane-padded to
    a multiple of 128 (padded w3 columns are zero, padded b3 entries are -1e30
    so softmax assigns them 0 probability).
    """
    def xavier_uniform(k, fan_in, fan_out):
        bound = math.sqrt(6.0 / (fan_in + fan_out))
        w = jax.random.uniform(k, (fan_in, fan_out), jnp.float32,
                               minval=-bound, maxval=bound)
        return w.astype(jnp.bfloat16)

    padded_action = _round_up(action_dim, 128)

    k1, k2, k3 = jax.random.split(key, 3)
    w3 = xavier_uniform(k3, 1024, action_dim)
    w3 = jnp.pad(w3, ((0, 0), (0, padded_action - action_dim)))
    b3 = jnp.concatenate(
        [jnp.zeros((1, action_dim), jnp.float32),
         jnp.full((1, padded_action - action_dim), -1e30, jnp.float32)],
        axis=1)

    return {
        "w1": xavier_uniform(k1, state_dim, 512),
        "b1": jnp.zeros((1, 512), jnp.float32),
        "w2": xavier_uniform(k2, 512, 1024),
        "b2": jnp.zeros((1, 1024), jnp.float32),
        "w3": w3,
        "b3": b3,
        "action_dim": action_dim,
    }


if __name__ == "__main__":
    batch = 8
    state_dim = 16
    action_dim = 8

    key = jax.random.PRNGKey(0)
    k_params, k_x = jax.random.split(key)

    params = init_params(k_params, state_dim, action_dim)
    x = jax.random.normal(k_x, (batch, state_dim), jnp.float32)

    out = policy_network_forward(x, params)
    out = jax.block_until_ready(out)

    # Pure-JAX reference mirroring the kernel's bf16-weight / f32-accumulate math.
    xb = x.astype(jnp.bfloat16)
    h1 = jnp.maximum(
        jnp.dot(xb, params["w1"], preferred_element_type=jnp.float32)
        + params["b1"], 0.0)
    h2 = jnp.maximum(
        jnp.dot(h1.astype(jnp.bfloat16), params["w2"],
                preferred_element_type=jnp.float32) + params["b2"], 0.0)
    logits = jnp.dot(h2.astype(jnp.bfloat16), params["w3"],
                     preferred_element_type=jnp.float32) + params["b3"]
    ref = jax.nn.softmax(logits, axis=1)[:, :action_dim]

    assert out.shape == (batch, action_dim)
    assert jnp.allclose(out, ref, atol=2e-3, rtol=2e-3)
    assert jnp.allclose(jnp.sum(out, axis=1), 1.0, atol=1e-3)

    print("KERNEL_OK")
</pallas_src>

<mosaic_0001>
module attributes {stable_mosaic.version = 11 : i64} {
  func.func @_policy_mlp_kernel(%arg0: i32, %arg1: memref<8x16xf32, #tpu.memory_space<vmem>>, %arg2: memref<16x512xbf16, #tpu.memory_space<vmem>>, %arg3: memref<1x512xf32, #tpu.memory_space<vmem>>, %arg4: memref<512x1024xbf16, #tpu.memory_space<vmem>>, %arg5: memref<1x1024xf32, #tpu.memory_space<vmem>>, %arg6: memref<1024x128xbf16, #tpu.memory_space<vmem>>, %arg7: memref<1x128xf32, #tpu.memory_space<vmem>>, %arg8: memref<8x128xf32, #tpu.memory_space<vmem>>) attributes {dimension_semantics = [#tpu.dimension_semantics<parallel>], iteration_bounds = array<i64: 1>, scalar_prefetch = 0 : i64, scratch_operands = 0 : i64, tpu.core_type = #tpu.core_type<tc>, window_params = [{transform_indices = @transform_0, window_bounds = array<i64: 8, 16>}, {pipeline_mode = #tpu.pipeline_mode<synchronous>, transform_indices = @transform_1, window_bounds = array<i64: 16, 512>}, {pipeline_mode = #tpu.pipeline_mode<synchronous>, transform_indices = @transform_2, window_bounds = array<i64: 1, 512>}, {pipeline_mode = #tpu.pipeline_mode<synchronous>, transform_indices = @transform_3, window_bounds = array<i64: 512, 1024>}, {pipeline_mode = #tpu.pipeline_mode<synchronous>, transform_indices = @transform_4, window_bounds = array<i64: 1, 1024>}, {pipeline_mode = #tpu.pipeline_mode<synchronous>, transform_indices = @transform_5, window_bounds = array<i64: 1024, 128>}, {pipeline_mode = #tpu.pipeline_mode<synchronous>, transform_indices = @transform_6, window_bounds = array<i64: 1, 128>}, {transform_indices = @transform_7, window_bounds = array<i64: 8, 128>}]} {
    %c0 = arith.constant 0 : index
    %c0_0 = arith.constant 0 : index
    %0 = vector.load %arg1[%c0, %c0_0] : memref<8x16xf32, #tpu.memory_space<vmem>>, vector<8x16xf32>
    %1 = arith.truncf %0 : vector<8x16xf32> to vector<8x16xbf16>
    %c0_1 = arith.constant 0 : index
    %c0_2 = arith.constant 0 : index
    %2 = vector.load %arg2[%c0_1, %c0_2] : memref<16x512xbf16, #tpu.memory_space<vmem>>, vector<16x512xbf16>
    %cst = arith.constant dense<0.000000e+00> : vector<8x512xf32>
    %3 = tpu.matmul %1, %2, %cst {dimension_numbers = #tpu.dot_dimension_numbers<[1], [0], [0], [1], [0, 0, 1, 1], [], []>} : vector<8x16xbf16>, vector<16x512xbf16>, vector<8x512xf32> -> vector<8x512xf32>
    %c0_3 = arith.constant 0 : index
    %c0_4 = arith.constant 0 : index
    %4 = vector.load %arg3[%c0_3, %c0_4] : memref<1x512xf32, #tpu.memory_space<vmem>>, vector<1x512xf32>
    %5 = vector.broadcast %4 : vector<1x512xf32> to vector<8x512xf32>
    %6 = arith.addf %3, %5 : vector<8x512xf32>
    %cst_5 = arith.constant 0.000000e+00 : f32
    %7 = vector.broadcast %cst_5 : f32 to vector<8x512xf32>
    %8 = arith.maximumf %6, %7 : vector<8x512xf32>
    %9 = arith.truncf %8 : vector<8x512xf32> to vector<8x512xbf16>
    %c0_6 = arith.constant 0 : index
    %c0_7 = arith.constant 0 : index
    %10 = vector.load %arg4[%c0_6, %c0_7] : memref<512x1024xbf16, #tpu.memory_space<vmem>>, vector<512x1024xbf16>
    %cst_8 = arith.constant dense<0.000000e+00> : vector<8x1024xf32>
    %11 = tpu.matmul %9, %10, %cst_8 {dimension_numbers = #tpu.dot_dimension_numbers<[1], [0], [0], [1], [0, 0, 1, 1], [], []>} : vector<8x512xbf16>, vector<512x1024xbf16>, vector<8x1024xf32> -> vector<8x1024xf32>
    %c0_9 = arith.constant 0 : index
    %c0_10 = arith.constant 0 : index
    %12 = vector.load %arg5[%c0_9, %c0_10] : memref<1x1024xf32, #tpu.memory_space<vmem>>, vector<1x1024xf32>
    %13 = vector.broadcast %12 : vector<1x1024xf32> to vector<8x1024xf32>
    %14 = arith.addf %11, %13 : vector<8x1024xf32>
    %cst_11 = arith.constant 0.000000e+00 : f32
    %15 = vector.broadcast %cst_11 : f32 to vector<8x1024xf32>
    %16 = arith.maximumf %14, %15 : vector<8x1024xf32>
    %17 = arith.truncf %16 : vector<8x1024xf32> to vector<8x1024xbf16>
    %c0_12 = arith.constant 0 : index
    %c0_13 = arith.constant 0 : index
    %18 = vector.load %arg6[%c0_12, %c0_13] : memref<1024x128xbf16, #tpu.memory_space<vmem>>, vector<1024x128xbf16>
    %cst_14 = arith.constant dense<0.000000e+00> : vector<8x128xf32>
    %19 = tpu.matmul %17, %18, %cst_14 {dimension_numbers = #tpu.dot_dimension_numbers<[1], [0], [0], [1], [0, 0, 1, 1], [], []>} : vector<8x1024xbf16>, vector<1024x128xbf16>, vector<8x128xf32> -> vector<8x128xf32>
    %c0_15 = arith.constant 0 : index
    %c0_16 = arith.constant 0 : index
    %20 = vector.load %arg7[%c0_15, %c0_16] : memref<1x128xf32, #tpu.memory_space<vmem>>, vector<1x128xf32>
    %21 = vector.broadcast %20 : vector<1x128xf32> to vector<8x128xf32>
    %22 = arith.addf %19, %21 : vector<8x128xf32>
    %cst_17 = arith.constant dense<0xFF800000> : vector<8xf32>
    %23 = vector.multi_reduction <maximumf>, %22, %cst_17 [1] : vector<8x128xf32> to vector<8xf32>
    %24 = vector.shape_cast %23 : vector<8xf32> to vector<8x1xf32>
    %25 = vector.broadcast %24 : vector<8x1xf32> to vector<8x128xf32>
    %26 = arith.subf %22, %25 : vector<8x128xf32>
    %27 = math.exp %26 : vector<8x128xf32>
    %cst_18 = arith.constant dense<0.000000e+00> : vector<8xf32>
    %28 = vector.multi_reduction <add>, %27, %cst_18 [1] : vector<8x128xf32> to vector<8xf32>
    %29 = vector.shape_cast %28 : vector<8xf32> to vector<8x1xf32>
    %cst_19 = arith.constant 1.000000e+00 : f32
    %30 = vector.broadcast %cst_19 : f32 to vector<8x1xf32>
    %31 = arith.divf %30, %29 : vector<8x1xf32>
    %32 = vector.broadcast %31 : vector<8x1xf32> to vector<8x128xf32>
    %33 = arith.mulf %27, %32 : vector<8x128xf32>
    %c0_20 = arith.constant 0 : index
    %c0_21 = arith.constant 0 : index
    %34 = vector.load %arg8[%c0_20, %c0_21] : memref<8x128xf32, #tpu.memory_space<vmem>>, vector<8x128xf32>
    tpu.vector_store %arg8[%c0_20, %c0_21], %33 {strides = array<i32>} : memref<8x128xf32, #tpu.memory_space<vmem>>, vector<8x128xf32>,
    return
  }
  func.func @transform_0(%arg0: i32) -> (i32, i32) {
    %c0_i32 = arith.constant 0 : i32
    %c0_i32_0 = arith.constant 0 : i32
    return %arg0, %c0_i32 : i32, i32
  }
  func.func @transform_1(%arg0: i32) -> (i32, i32) {
    %c0_i32 = arith.constant 0 : i32
    %c0_i32_0 = arith.constant 0 : i32
    %c0_i32_1 = arith.constant 0 : i32
    return %c0_i32, %c0_i32_0 : i32, i32
  }
  func.func @transform_2(%arg0: i32) -> (i32, i32) {
    %c0_i32 = arith.constant 0 : i32
    %c0_i32_0 = arith.constant 0 : i32
    %c0_i32_1 = arith.constant 0 : i32
    return %c0_i32, %c0_i32_0 : i32, i32
  }
  func.func @transform_3(%arg0: i32) -> (i32, i32) {
    %c0_i32 = arith.constant 0 : i32
    %c0_i32_0 = arith.constant 0 : i32
    %c0_i32_1 = arith.constant 0 : i32
    return %c0_i32, %c0_i32_0 : i32, i32
  }
  func.func @transform_4(%arg0: i32) -> (i32, i32) {
    %c0_i32 = arith.constant 0 : i32
    %c0_i32_0 = arith.constant 0 : i32
    %c0_i32_1 = arith.constant 0 : i32
    return %c0_i32, %c0_i32_0 : i32, i32
  }
  func.func @transform_5(%arg0: i32) -> (i32, i32) {
    %c0_i32 = arith.constant 0 : i32
    %c0_i32_0 = arith.constant 0 : i32
    %c0_i32_1 = arith.constant 0 : i32
    return %c0_i32, %c0_i32_0 : i32, i32
  }
  func.func @transform_6(%arg0: i32) -> (i32, i32) {
    %c0_i32 = arith.constant 0 : i32
    %c0_i32_0 = arith.constant 0 : i32
    %c0_i32_1 = arith.constant 0 : i32
    return %c0_i32, %c0_i32_0 : i32, i32
  }
  func.func @transform_7(%arg0: i32) -> (i32, i32) {
    %c0_i32 = arith.constant 0 : i32
    %c0_i32_0 = arith.constant 0 : i32
    return %arg0, %c0_i32 : i32, i32
  }
}

</mosaic_0001>

<llo_original>
// kernel: tpu_custom_call.1
$region0: #{tpu_custom_call.1}
  #allocation0 [shape = 'u32[]', space=smem, size = 0x4, offset = 0x4, fixed_abs, tag = 'smem constant byte address 0x4 - core index']
  #allocation1 [shape = 'u32[72,128]{1,0:T(1,128)}', space=vmem, size = 0x9000, scoped, tag = 'internal scratch']
  %s0 = inlined_call_operand.hbm [shape: f32[8,16], index: 0, kind: input, shape index: {}]
  %s1 = inlined_call_operand.hbm [shape: bf16[16,512], index: 1, kind: input, shape index: {}]
  %s2 = inlined_call_operand.hbm [shape: f32[1,512], index: 2, kind: input, shape index: {}]
  %s3 = inlined_call_operand.hbm [shape: bf16[512,1024], index: 3, kind: input, shape index: {}]
  %s4 = inlined_call_operand.hbm [shape: f32[1,1024], index: 4, kind: input, shape index: {}]
  %s5 = inlined_call_operand.hbm [shape: bf16[1024,128], index: 5, kind: input, shape index: {}]
  %s6 = inlined_call_operand.vmem [shape: f32[1,128], index: 6, kind: input, shape index: {}]
  %s7 = inlined_call_operand.hbm [shape: f32[8,128], index: 7, kind: output, shape index: {}]
  %s8 = sld [smem:[#allocation0]]
  $region62: #{tpu_custom_call.1} parent=0
    _
  %s10 = ssub.s32 1, %s8
  %s11 = scalar_select 0, %s10, %s8
  $region1: #{tpu_custom_call.1} parent=0
    #allocation2 [shape = 'u8[4096]{0}', space=vmem, size = 0x1000, scoped, tag = 'input window, operand 0, single buffered']
    #allocation3 [shape = 's32[1]{0}', space=sflag, size = 0x4, scoped, tag = 'scoped memory for tpu_custom_call.1']
    #allocation4 [shape = 's32[1]{0}', space=sflag, size = 0x4, scoped, tag = 'scoped memory for tpu_custom_call.1']
    #allocation5 [shape = 'u8[16384]{0}', space=vmem, size = 0x4000, scoped, tag = 'input window, operand 1, single buffered']
    #allocation6 [shape = 's32[1]{0}', space=sflag, size = 0x4, scoped, tag = 'scoped memory for tpu_custom_call.1']
    #allocation7 [shape = 'u8[2048]{0}', space=vmem, size = 0x800, scoped, tag = 'input window, operand 2, single buffered']
    #allocation8 [shape = 'u8[1048576]{0}', space=vmem, size = 0x100000, scoped, tag = 'input window, operand 3, single buffered']
    #allocation9 [shape = 's32[1]{0}', space=sflag, size = 0x4, scoped, tag = 'scoped memory for tpu_custom_call.1']
    #allocation10 [shape = 'u8[4096]{0}', space=vmem, size = 0x1000, scoped, tag = 'input window, operand 4, single buffered']
    #allocation11 [shape = 'u8[262144]{0}', space=vmem, size = 0x40000, scoped, tag = 'input window, operand 5, single buffered']
    #allocation12 [shape = 's32[1]{0}', space=sflag, size = 0x4, scoped, tag = 'scoped memory for tpu_custom_call.1']
    #allocation13 [shape = 'u8[4096]{0}', space=vmem, size = 0x1000, scoped, tag = 'output window, operand 0, single buffered']
    %12 = vsyncpa [#allocation3], 0
    %13 = vsyncpa [#allocation6], 0
    %14 = vsyncpa [#allocation9], 0
    %15 = vsyncpa [#allocation12], 0
    %16 = vsyncpa [#allocation4], 0
    // Predicated region
    $region2: #{tpu_custom_call.1} parent=1 // pred_check
      _
    $region3: #{tpu_custom_call.1} parent=1 // pred_check_branch
      %18 = sbr.rel (0) target = $region5
    $region4: #{tpu_custom_call.1} parent=1 // pred_region
      %20 = vsyncadd [#allocation3], 0
      %s22 = sshll.u32 %s0, 4
      %s23 = int_to_ptr.hbm [resolvable:$true] %s22
      %s24 = sshll.u32 [#allocation2], 4
      %s25 = int_to_ptr.vmem [resolvable:$true] %s24
      %27 = dma.hbm_to_vmem [thread:$0]  %s23, 128, %s25, [#allocation3]
    $region5: #{tpu_custom_call.1} parent=1 // pred_fallthru
      _
    // Predicated region
    $region6: #{tpu_custom_call.1} parent=1 // pred_check
      _
    $region7: #{tpu_custom_call.1} parent=1 // pred_check_branch
      %29 = sbr.rel (0) target = $region9
    $region8: #{tpu_custom_call.1} parent=1 // pred_region
      %31 = vsyncadd [#allocation6], 0
      %s32 = sshll.u32 %s1, 4
      %s33 = int_to_ptr.hbm [resolvable:$true] %s32
      %s34 = sshll.u32 [#allocation5], 4
      %s35 = int_to_ptr.vmem [resolvable:$true] %s34
      %40 = dma.hbm_to_vmem [thread:$0]  %s33, 512, %s35, [#allocation6], 256, 256, 16
    $region9: #{tpu_custom_call.1} parent=1 // pred_fallthru
      _
    // Predicated region
    $region10: #{tpu_custom_call.1} parent=1 // pred_check
      _
    $region11: #{tpu_custom_call.1} parent=1 // pred_check_branch
      %42 = sbr.rel (0) target = $region13
    $region12: #{tpu_custom_call.1} parent=1 // pred_region
      %44 = vsyncadd [#allocation6], 0
      %s46 = sshll.u32 %s2, 4
      %s47 = int_to_ptr.hbm [resolvable:$true] %s46
      %s48 = sshll.u32 [#allocation7], 4
      %s49 = int_to_ptr.vmem [resolvable:$true] %s48
      %51 = dma.hbm_to_vmem [thread:$0]  %s47, 64, %s49, [#allocation6]
    $region13: #{tpu_custom_call.1} parent=1 // pred_fallthru
      _
    // Predicated region
    $region14: #{tpu_custom_call.1} parent=1 // pred_check
      _
    $region15: #{tpu_custom_call.1} parent=1 // pred_check_branch
      %53 = sbr.rel (0) target = $region17
    $region16: #{tpu_custom_call.1} parent=1 // pred_region
      %55 = vsyncadd [#allocation9], 0
      %s56 = sshll.u32 %s3, 4
      %s57 = int_to_ptr.hbm [resolvable:$true] %s56
      %s58 = sshll.u32 [#allocation8], 4
      %s59 = int_to_ptr.vmem [resolvable:$true] %s58
      %64 = dma.hbm_to_vmem [thread:$0]  %s57, 32768, %s59, [#allocation9], 512, 512, 32
    $region17: #{tpu_custom_call.1} parent=1 // pred_fallthru
      _
    // Predicated region
    $region18: #{tpu_custom_call.1} parent=1 // pred_check
      _
    $region19: #{tpu_custom_call.1} parent=1 // pred_check_branch
      %66 = sbr.rel (0) target = $region21
    $region20: #{tpu_custom_call.1} parent=1 // pred_region
      %68 = vsyncadd [#allocation9], 0
      %s70 = sshll.u32 %s4, 4
      %s71 = int_to_ptr.hbm [resolvable:$true] %s70
      %s72 = sshll.u32 [#allocation10], 4
      %s73 = int_to_ptr.vmem [resolvable:$true] %s72
      %75 = dma.hbm_to_vmem [thread:$0]  %s71, 128, %s73, [#allocation9]
    $region21: #{tpu_custom_call.1} parent=1 // pred_fallthru
      _
    // Predicated region
    $region22: #{tpu_custom_call.1} parent=1 // pred_check
      _
    $region23: #{tpu_custom_call.1} parent=1 // pred_check_branch
      %77 = sbr.rel (0) target = $region25
    $region24: #{tpu_custom_call.1} parent=1 // pred_region
      %79 = vsyncadd [#allocation12], 0
      %s80 = sshll.u32 %s5, 4
      %s81 = int_to_ptr.hbm [resolvable:$true] %s80
      %s82 = sshll.u32 [#allocation11], 4
      %s83 = int_to_ptr.vmem [resolvable:$true] %s82
      %88 = dma.hbm_to_vmem [thread:$0]  %s81, 8192, %s83, [#allocation12], 64, 64, 4
    $region25: #{tpu_custom_call.1} parent=1 // pred_fallthru
      _
    // Predicated region
    $region26: #{tpu_custom_call.1} parent=1 // pred_check
      _
    $region27: #{tpu_custom_call.1} parent=1 // pred_check_branch
      %90 = sbr.rel (0) target = $region29
    $region28: #{tpu_custom_call.1} parent=1 // pred_region
      _
    $region29: #{tpu_custom_call.1} parent=1 // pred_fallthru
      _
    // Predicated region
    $region30: #{tpu_custom_call.1} parent=1 // pred_check
      _
    $region31: #{tpu_custom_call.1} parent=1 // pred_check_branch
      %92 = sbr.rel (0) target = $region33
    $region32: #{tpu_custom_call.1} parent=1 // pred_region
      %94 = dma.done [#allocation3], 128
    $region33: #{tpu_custom_call.1} parent=1 // pred_fallthru
      _
    // Predicated region
    $region34: #{tpu_custom_call.1} parent=1 // pred_check
      _
    $region35: #{tpu_custom_call.1} parent=1 // pred_check_branch
      %96 = sbr.rel (0) target = $region37
    $region36: #{tpu_custom_call.1} parent=1 // pred_region
      %98 = dma.done [#allocation6], 512
    $region37: #{tpu_custom_call.1} parent=1 // pred_fallthru
      _
    // Predicated region
    $region38: #{tpu_custom_call.1} parent=1 // pred_check
      _
    $region39: #{tpu_custom_call.1} parent=1 // pred_check_branch
      %100 = sbr.rel (0) target = $region41
    $region40: #{tpu_custom_call.1} parent=1 // pred_region
      %102 = dma.done [#allocation6], 64
    $region41: #{tpu_custom_call.1} parent=1 // pred_fallthru
      _
    // Predicated region
    $region42: #{tpu_custom_call.1} parent=1 // pred_check
      _
    $region43: #{tpu_custom_call.1} parent=1 // pred_check_branch
      %104 = sbr.rel (0) target = $region45
    $region44: #{tpu_custom_call.1} parent=1 // pred_region
      %106 = dma.done [#allocation9], 32768
    $region45: #{tpu_custom_call.1} parent=1 // pred_fallthru
      _
    // Predicated region
    $region46: #{tpu_custom_call.1} parent=1 // pred_check
      _
    $region47: #{tpu_custom_call.1} parent=1 // pred_check_branch
      %108 = sbr.rel (0) target = $region49
    $region48: #{tpu_custom_call.1} parent=1 // pred_region
      %110 = dma.done [#allocation9], 128
    $region49: #{tpu_custom_call.1} parent=1 // pred_fallthru
      _
    // Predicated region
    $region50: #{tpu_custom_call.1} parent=1 // pred_check
      _
    $region51: #{tpu_custom_call.1} parent=1 // pred_check_branch
      %112 = sbr.rel (0) target = $region53
    $region52: #{tpu_custom_call.1} parent=1 // pred_region
      %114 = dma.done [#allocation12], 8192
    $region53: #{tpu_custom_call.1} parent=1 // pred_fallthru
      _
    %v116 = vld [vmem:[#allocation2] sm:$0xff]
    %v117 = vpack.c.bf16 %v116, %v116
    %v118 = vld [vmem:[#allocation5] sm:$0xff]
    %v119 = vld [vmem:[#allocation5 + $0x8] sm:$0xff]
    %v120 = vld [vmem:[#allocation5 + $0x10] sm:$0xff]
    %v121 = vld [vmem:[#allocation5 + $0x18] sm:$0xff]
    %v122 = vld [vmem:[#allocation7] sm:$0xf]
    %v124 = vperm.slane %v122, 0
    %v125 = vperm.slane %v122, 1
    %v126 = vperm.slane %v122, 2
    %v127 = vperm.slane %v122, 3
    %v136 = vunpack.c.l.b16 %v118
    %v137 = vunpack.c.h.b16 %v118
    %v138 = vunpack.c.l.b16 %v119
    %v139 = vunpack.c.h.b16 %v119
    %v140 = vunpack.c.l.b16 %v120
    %v141 = vunpack.c.h.b16 %v120
    %v142 = vunpack.c.l.b16 %v121
    %v143 = vunpack.c.h.b16 %v121
    %v144 = vpack.c.b16 %v140, %v136
    %v145 = vpack.c.b16 %v141, %v137
    %v146 = vpack.c.b16 %v142, %v138
    %v147 = vpack.c.b16 %v143, %v139
    %vm152 = vcmask 130048
    %v154 = vsel %vm152, %v117, 0
    %156 = vmatpush.bf16.msra.mxu0 0
    %157 = vmatpush.bf16.msra.mxu0 0
    %158 = vmatpush.bf16.msra.mxu0 0
    %159 = vmatpush.bf16.msra.mxu0 0
    %160 = vmatpush.bf16.msra.mxu0 0
    %161 = vmatpush.bf16.msra.mxu0 0
    %162 = vmatpush.bf16.msra.mxu0 0
    %163 = vmatpush.bf16.msra.mxu0 %v144
    %164 = vmatmul.bf16.gmra.mxu0 %v154
    %v165 = vpop.f32.mrf.mxu0
    %v166 = vadd.f32 %v124, %v165
    %v167 = vpop.f32.mrf.mxu0
    %168 = vdwg.mxu0
    %169 = vmatpush.bf16.msra.mxu0 0
    %170 = vmatpush.bf16.msra.mxu0 0
    %171 = vmatpush.bf16.msra.mxu0 0
    %172 = vmatpush.bf16.msra.mxu0 0
    %173 = vmatpush.bf16.msra.mxu0 0
    %174 = vmatpush.bf16.msra.mxu0 0
    %175 = vmatpush.bf16.msra.mxu0 0
    %176 = vmatpush.bf16.msra.mxu0 %v145
    %177 = vmatmul.bf16.gmra.mxu0 %v154
    %v178 = vpop.f32.mrf.mxu0
    %v179 = vadd.f32 %v125, %v178
    %v180 = vpop.f32.mrf.mxu0
    %181 = vdwg.mxu0
    %182 = vmatpush.bf16.msra.mxu0 0
    %183 = vmatpush.bf16.msra.mxu0 0
    %184 = vmatpush.bf16.msra.mxu0 0
    %185 = vmatpush.bf16.msra.mxu0 0
    %186 = vmatpush.bf16.msra.mxu0 0
    %187 = vmatpush.bf16.msra.mxu0 0
    %188 = vmatpush.bf16.msra.mxu0 0
    %189 = vmatpush.bf16.msra.mxu0 %v146
    %190 = vmatmul.bf16.gmra.mxu0 %v154
    %v191 = vpop.f32.mrf.mxu0
    %v192 = vadd.f32 %v126, %v191
    %v193 = vpop.f32.mrf.mxu0
    %194 = vdwg.mxu0
    %195 = vmatpush.bf16.msra.mxu0 0
    %196 = vmatpush.bf16.msra.mxu0 0
    %197 = vmatpush.bf16.msra.mxu0 0
    %198 = vmatpush.bf16.msra.mxu0 0
    %199 = vmatpush.bf16.msra.mxu0 0
    %200 = vmatpush.bf16.msra.mxu0 0
    %201 = vmatpush.bf16.msra.mxu0 0
    %202 = vmatpush.bf16.msra.mxu0 %v147
    %203 = vmatmul.bf16.gmra.mxu0 %v154
    %v204 = vpop.f32.mrf.mxu0
    %v205 = vadd.f32 %v127, %v204
    %v206 = vpop.f32.mrf.mxu0
    %207 = vdwg.mxu0
    %v208 = vmax.f32 %v166, 0.0
    %v209 = vmax.f32 %v179, 0.0
    %v210 = vmax.f32 %v192, 0.0
    %v211 = vmax.f32 %v205, 0.0
    %v212 = vpack.c.bf16 %v208, %v208
    %v213 = vpack.c.bf16 %v209, %v209
    %v214 = vpack.c.bf16 %v210, %v210
    %v215 = vpack.c.bf16 %v211, %v211
    %v216 = vld [vmem:[#allocation8] sm:$0xff]
    %v217 = vld [vmem:[#allocation8 + $0x8] sm:$0xff]
    %v218 = vld [vmem:[#allocation8 + $0x10] sm:$0xff]
    %v219 = vld [vmem:[#allocation8 + $0x18] sm:$0xff]
    %v220 = vld [vmem:[#allocation8 + $0x20] sm:$0xff]
    %v221 = vld [vmem:[#allocation8 + $0x28] sm:$0xff]
    %v222 = vld [vmem:[#allocation8 + $0x30] sm:$0xff]
    %v223 = vld [vmem:[#allocation8 + $0x38] sm:$0xff]
    %v224 = vld [vmem:[#allocation8 + $0x40] sm:$0xff]
    %v225 = vld [vmem:[#allocation8 + $0x48] sm:$0xff]
    %v226 = vld [vmem:[#allocation8 + $0x50] sm:$0xff]
    %v227 = vld [vmem:[#allocation8 + $0x58] sm:$0xff]
    %v228 = vld [vmem:[#allocation8 + $0x60] sm:$0xff]
    %v229 = vld [vmem:[#allocation8 + $0x68] sm:$0xff]
    %v230 = vld [vmem:[#allocation8 + $0x70] sm:$0xff]
    %v231 = vld [vmem:[#allocation8 + $0x78] sm:$0xff]
    %v232 = vld [vmem:[#allocation8 + $0x80] sm:$0xff]
    %v233 = vld [vmem:[#allocation8 + $0x88] sm:$0xff]
    %v234 = vld [vmem:[#allocation8 + $0x90] sm:$0xff]
    %v235 = vld [vmem:[#allocation8 + $0x98] sm:$0xff]
    %v236 = vld [vmem:[#allocation8 + $0xa0] sm:$0xff]
    %v237 = vld [vmem:[#allocation8 + $0xa8] sm:$0xff]
    %v238 = vld [vmem:[#allocation8 + $0xb0] sm:$0xff]
    %v239 = vld [vmem:[#allocation8 + $0xb8] sm:$0xff]
    %v240 = vld [vmem:[#allocation8 + $0xc0] sm:$0xff]
    %v241 = vld [vmem:[#allocation8 + $0xc8] sm:$0xff]
    %v242 = vld [vmem:[#allocation8 + $0xd0] sm:$0xff]
    %v243 = vld [vmem:[#allocation8 + $0xd8] sm:$0xff]
    %v244 = vld [vmem:[#allocation8 + $0xe0] sm:$0xff]
    %v245 = vld [vmem:[#allocation8 + $0xe8] sm:$0xff]
    %v246 = vld [vmem:[#allocation8 + $0xf0] sm:$0xff]
    %v247 = vld [vmem:[#allocation8 + $0xf8] sm:$0xff]
    %v248 = vld [vmem:[#allocation8 + $0x100] sm:$0xff]
    %v249 = vld [vmem:[#allocation8 + $0x108] sm:$0xff]
    %v250 = vld [vmem:[#allocation8 + $0x110] sm:$0xff]
    %v251 = vld [vmem:[#allocation8 + $0x118] sm:$0xff]
    %v252 = vld [vmem:[#allocation8 + $0x120] sm:$0xff]
    %v253 = vld [vmem:[#allocation8 + $0x128] sm:$0xff]
    %v254 = vld [vmem:[#allocation8 + $0x130] sm:$0xff]
    %v255 = vld [vmem:[#allocation8 + $0x138] sm:$0xff]
    %v256 = vld [vmem:[#allocation8 + $0x140] sm:$0xff]
    %v257 = vld [vmem:[#allocation8 + $0x148] sm:$0xff]
    %v258 = vld [vmem:[#allocation8 + $0x150] sm:$0xff]
    %v259 = vld [vmem:[#allocation8 + $0x158] sm:$0xff]
    %v260 = vld [vmem:[#allocation8 + $0x160] sm:$0xff]
    %v261 = vld [vmem:[#allocation8 + $0x168] sm:$0xff]
    %v262 = vld [vmem:[#allocation8 + $0x170] sm:$0xff]
    %v263 = vld [vmem:[#allocation8 + $0x178] sm:$0xff]
    %v264 = vld [vmem:[#allocation8 + $0x180] sm:$0xff]
    %v265 = vld [vmem:[#allocation8 + $0x188] sm:$0xff]
    %v266 = vld [vmem:[#allocation8 + $0x190] sm:$0xff]
    %v267 = vld [vmem:[#allocation8 + $0x198] sm:$0xff]
    %v268 = vld [vmem:[#allocation8 + $0x1a0] sm:$0xff]
    %v269 = vld [vmem:[#allocation8 + $0x1a8] sm:$0xff]
    %v270 = vld [vmem:[#allocation8 + $0x1b0] sm:$0xff]
    %v271 = vld [vmem:[#allocation8 + $0x1b8] sm:$0xff]
    %v272 = vld [vmem:[#allocation8 + $0x1c0] sm:$0xff]
    %v273 = vld [vmem:[#allocation8 + $0x1c8] sm:$0xff]
    %v274 = vld [vmem:[#allocation8 + $0x1d0] sm:$0xff]
    %v275 = vld [vmem:[#allocation8 + $0x1d8] sm:$0xff]
    %v276 = vld [vmem:[#allocation8 + $0x1e0] sm:$0xff]
    %v277 = vld [vmem:[#allocation8 + $0x1e8] sm:$0xff]
    %v278 = vld [vmem:[#allocation8 + $0x1f0] sm:$0xff]
    %v279 = vld [vmem:[#allocation8 + $0x1f8] sm:$0xff]
    %v280 = vld [vmem:[#allocation8 + $0x200] sm:$0xff]
    %v281 = vld [vmem:[#allocation8 + $0x208] sm:$0xff]
    %v282 = vld [vmem:[#allocation8 + $0x210] sm:$0xff]
    %v283 = vld [vmem:[#allocation8 + $0x218] sm:$0xff]
    %v284 = vld [vmem:[#allocation8 + $0x220] sm:$0xff]
    %v285 = vld [vmem:[#allocation8 + $0x228] sm:$0xff]
    %v286 = vld [vmem:[#allocation8 + $0x230] sm:$0xff]
    %v287 = vld [vmem:[#allocation8 + $0x238] sm:$0xff]
    %v288 = vld [vmem:[#allocation8 + $0x240] sm:$0xff]
    %v289 = vld [vmem:[#allocation8 + $0x248] sm:$0xff]
    %v290 = vld [vmem:[#allocation8 + $0x250] sm:$0xff]
    %v291 = vld [vmem:[#allocation8 + $0x258] sm:$0xff]
    %v292 = vld [vmem:[#allocation8 + $0x260] sm:$0xff]
    %v293 = vld [vmem:[#allocation8 + $0x268] sm:$0xff]
    %v294 = vld [vmem:[#allocation8 + $0x270] sm:$0xff]
    %v295 = vld [vmem:[#allocation8 + $0x278] sm:$0xff]
    %v296 = vld [vmem:[#allocation8 + $0x280] sm:$0xff]
    %v297 = vld [vmem:[#allocation8 + $0x288] sm:$0xff]
    %v298 = vld [vmem:[#allocation8 + $0x290] sm:$0xff]
    %v299 = vld [vmem:[#allocation8 + $0x298] sm:$0xff]
    %v300 = vld [vmem:[#allocation8 + $0x2a0] sm:$0xff]
    %v301 = vld [vmem:[#allocation8 + $0x2a8] sm:$0xff]
    %v302 = vld [vmem:[#allocation8 + $0x2b0] sm:$0xff]
    %v303 = vld [vmem:[#allocation8 + $0x2b8] sm:$0xff]
    %v304 = vld [vmem:[#allocation8 + $0x2c0] sm:$0xff]
    %v305 = vld [vmem:[#allocation8 + $0x2c8] sm:$0xff]
    %v306 = vld [vmem:[#allocation8 + $0x2d0] sm:$0xff]
    %v307 = vld [vmem:[#allocation8 + $0x2d8] sm:$0xff]
    %v308 = vld [vmem:[#allocation8 + $0x2e0] sm:$0xff]
    %v309 = vld [vmem:[#allocation8 + $0x2e8] sm:$0xff]
    %v310 = vld [vmem:[#allocation8 + $0x2f0] sm:$0xff]
    %v311 = vld [vmem:[#allocation8 + $0x2f8] sm:$0xff]
    %v312 = vld [vmem:[#allocation8 + $0x300] sm:$0xff]
    %v313 = vld [vmem:[#allocation8 + $0x308] sm:$0xff]
    %v314 = vld [vmem:[#allocation8 + $0x310] sm:$0xff]
    %v315 = vld [vmem:[#allocation8 + $0x318] sm:$0xff]
    %v316 = vld [vmem:[#allocation8 + $0x320] sm:$0xff]
    %v317 = vld [vmem:[#allocation8 + $0x328] sm:$0xff]
    %v318 = vld [vmem:[#allocation8 + $0x330] sm:$0xff]
    %v319 = vld [vmem:[#allocation8 + $0x338] sm:$0xff]
    %v320 = vld [vmem:[#allocation8 + $0x340] sm:$0xff]
    %v321 = vld [vmem:[#allocation8 + $0x348] sm:$0xff]
    %v322 = vld [vmem:[#allocation8 + $0x350] sm:$0xff]
    %v323 = vld [vmem:[#allocation8 + $0x358] sm:$0xff]
    %v324 = vld [vmem:[#allocation8 + $0x360] sm:$0xff]
    %v325 = vld [vmem:[#allocation8 + $0x368] sm:$0xff]
    %v326 = vld [vmem:[#allocation8 + $0x370] sm:$0xff]
    %v327 = vld [vmem:[#allocation8 + $0x378] sm:$0xff]
    %v328 = vld [vmem:[#allocation8 + $0x380] sm:$0xff]
    %v329 = vld [vmem:[#allocation8 + $0x388] sm:$0xff]
    %v330 = vld [vmem:[#allocation8 + $0x390] sm:$0xff]
    %v331 = vld [vmem:[#allocation8 + $0x398] sm:$0xff]
    %v332 = vld [vmem:[#allocation8 + $0x3a0] sm:$0xff]
    %v333 = vld [vmem:[#allocation8 + $0x3a8] sm:$0xff]
    %v334 = vld [vmem:[#allocation8 + $0x3b0] sm:$0xff]
    %v335 = vld [vmem:[#allocation8 + $0x3b8] sm:$0xff]
    %v336 = vld [vmem:[#allocation8 + $0x3c0] sm:$0xff]
    %v337 = vld [vmem:[#allocation8 + $0x3c8] sm:$0xff]
    %v338 = vld [vmem:[#allocation8 + $0x3d0] sm:$0xff]
    %v339 = vld [vmem:[#allocation8 + $0x3d8] sm:$0xff]
    %v340 = vld [vmem:[#allocation8 + $0x3e0] sm:$0xff]
    %v341 = vld [vmem:[#allocation8 + $0x3e8] sm:$0xff]
    %v342 = vld [vmem:[#allocation8 + $0x3f0] sm:$0xff]
    %v343 = vld [vmem:[#allocation8 + $0x3f8] sm:$0xff]
    %v344 = vld [vmem:[#allocation8 + $0x400] sm:$0xff]
    %v345 = vld [vmem:[#allocation8 + $0x408] sm:$0xff]
    %v346 = vld [vmem:[#allocation8 + $0x410] sm:$0xff]
    %v347 = vld [vmem:[#allocation8 + $0x418] sm:$0xff]
    %v348 = vld [vmem:[#allocation8 + $0x420] sm:$0xff]
    %v349 = vld [vmem:[#allocation8 + $0x428] sm:$0xff]
    %v350 = vld [vmem:[#allocation8 + $0x430] sm:$0xff]
    %v351 = vld [vmem:[#allocation8 + $0x438] sm:$0xff]
    %v352 = vld [vmem:[#allocation8 + $0x440] sm:$0xff]
    %v353 = vld [vmem:[#allocation8 + $0x448] sm:$0xff]
    %v354 = vld [vmem:[#allocation8 + $0x450] sm:$0xff]
    %v355 = vld [vmem:[#allocation8 + $0x458] sm:$0xff]
    %v356 = vld [vmem:[#allocation8 + $0x460] sm:$0xff]
    %v357 = vld [vmem:[#allocation8 + $0x468] sm:$0xff]
    %v358 = vld [vmem:[#allocation8 + $0x470] sm:$0xff]
    %v359 = vld [vmem:[#allocation8 + $0x478] sm:$0xff]
    %v360 = vld [vmem:[#allocation8 + $0x480] sm:$0xff]
    %v361 = vld [vmem:[#allocation8 + $0x488] sm:$0xff]
    %v362 = vld [vmem:[#allocation8 + $0x490] sm:$0xff]
    %v363 = vld [vmem:[#allocation8 + $0x498] sm:$0xff]
    %v364 = vld [vmem:[#allocation8 + $0x4a0] sm:$0xff]
    %v365 = vld [vmem:[#allocation8 + $0x4a8] sm:$0xff]
    %v366 = vld [vmem:[#allocation8 + $0x4b0] sm:$0xff]
    %v367 = vld [vmem:[#allocation8 + $0x4b8] sm:$0xff]
    %v368 = vld [vmem:[#allocation8 + $0x4c0] sm:$0xff]
    %v369 = vld [vmem:[#allocation8 + $0x4c8] sm:$0xff]
    %v370 = vld [vmem:[#allocation8 + $0x4d0] sm:$0xff]
    %v371 = vld [vmem:[#allocation8 + $0x4d8] sm:$0xff]
    %v372 = vld [vmem:[#allocation8 + $0x4e0] sm:$0xff]
    %v373 = vld [vmem:[#allocation8 + $0x4e8] sm:$0xff]
    %v374 = vld [vmem:[#allocation8 + $0x4f0] sm:$0xff]
    %v375 = vld [vmem:[#allocation8 + $0x4f8] sm:$0xff]
    %v376 = vld [vmem:[#allocation8 + $0x500] sm:$0xff]
    %v377 = vld [vmem:[#allocation8 + $0x508] sm:$0xff]
    %v378 = vld [vmem:[#allocation8 + $0x510] sm:$0xff]
    %v379 = vld [vmem:[#allocation8 + $0x518] sm:$0xff]
    %v380 = vld [vmem:[#allocation8 + $0x520] sm:$0xff]
    %v381 = vld [vmem:[#allocation8 + $0x528] sm:$0xff]
    %v382 = vld [vmem:[#allocation8 + $0x530] sm:$0xff]
    %v383 = vld [vmem:[#allocation8 + $0x538] sm:$0xff]
    %v384 = vld [vmem:[#allocation8 + $0x540] sm:$0xff]
    %v385 = vld [vmem:[#allocation8 + $0x548] sm:$0xff]
    %v386 = vld [vmem:[#allocation8 + $0x550] sm:$0xff]
    %v387 = vld [vmem:[#allocation8 + $0x558] sm:$0xff]
    %v388 = vld [vmem:[#allocation8 + $0x560] sm:$0xff]
    %v389 = vld [vmem:[#allocation8 + $0x568] sm:$0xff]
    %v390 = vld [vmem:[#allocation8 + $0x570] sm:$0xff]
    %v391 = vld [vmem:[#allocation8 + $0x578] sm:$0xff]
    %v392 = vld [vmem:[#allocation8 + $0x580] sm:$0xff]
    %v393 = vld [vmem:[#allocation8 + $0x588] sm:$0xff]
    %v394 = vld [vmem:[#allocation8 + $0x590] sm:$0xff]
    %v395 = vld [vmem:[#allocation8 + $0x598] sm:$0xff]
    %v396 = vld [vmem:[#allocation8 + $0x5a0] sm:$0xff]
    %v397 = vld [vmem:[#allocation8 + $0x5a8] sm:$0xff]
    %v398 = vld [vmem:[#allocation8 + $0x5b0] sm:$0xff]
    %v399 = vld [vmem:[#allocation8 + $0x5b8] sm:$0xff]
    %v400 = vld [vmem:[#allocation8 + $0x5c0] sm:$0xff]
    %v401 = vld [vmem:[#allocation8 + $0x5c8] sm:$0xff]
    %v402 = vld [vmem:[#allocation8 + $0x5d0] sm:$0xff]
    %v403 = vld [vmem:[#allocation8 + $0x5d8] sm:$0xff]
    %v404 = vld [vmem:[#allocation8 + $0x5e0] sm:$0xff]
    %v405 = vld [vmem:[#allocation8 + $0x5e8] sm:$0xff]
    %v406 = vld [vmem:[#allocation8 + $0x5f0] sm:$0xff]
    %v407 = vld [vmem:[#allocation8 + $0x5f8] sm:$0xff]
    %v408 = vld [vmem:[#allocation8 + $0x600] sm:$0xff]
    %v409 = vld [vmem:[#allocation8 + $0x608] sm:$0xff]
    %v410 = vld [vmem:[#allocation8 + $0x610] sm:$0xff]
    %v411 = vld [vmem:[#allocation8 + $0x618] sm:$0xff]
    %v412 = vld [vmem:[#allocation8 + $0x620] sm:$0xff]
    %v413 = vld [vmem:[#allocation8 + $0x628] sm:$0xff]
    %v414 = vld [vmem:[#allocation8 + $0x630] sm:$0xff]
    %v415 = vld [vmem:[#allocation8 + $0x638] sm:$0xff]
    %v416 = vld [vmem:[#allocation8 + $0x640] sm:$0xff]
    %v417 = vld [vmem:[#allocation8 + $0x648] sm:$0xff]
    %v418 = vld [vmem:[#allocation8 + $0x650] sm:$0xff]
    %v419 = vld [vmem:[#allocation8 + $0x658] sm:$0xff]
    %v420 = vld [vmem:[#allocation8 + $0x660] sm:$0xff]
    %v421 = vld [vmem:[#allocation8 + $0x668] sm:$0xff]
    %v422 = vld [vmem:[#allocation8 + $0x670] sm:$0xff]
    %v423 = vld [vmem:[#allocation8 + $0x678] sm:$0xff]
    %v424 = vld [vmem:[#allocation8 + $0x680] sm:$0xff]
    %v425 = vld [vmem:[#allocation8 + $0x688] sm:$0xff]
    %v426 = vld [vmem:[#allocation8 + $0x690] sm:$0xff]
    %v427 = vld [vmem:[#allocation8 + $0x698] sm:$0xff]
    %v428 = vld [vmem:[#allocation8 + $0x6a0] sm:$0xff]
    %v429 = vld [vmem:[#allocation8 + $0x6a8] sm:$0xff]
    %v430 = vld [vmem:[#allocation8 + $0x6b0] sm:$0xff]
    %v431 = vld [vmem:[#allocation8 + $0x6b8] sm:$0xff]
    %v432 = vld [vmem:[#allocation8 + $0x6c0] sm:$0xff]
    %v433 = vld [vmem:[#allocation8 + $0x6c8] sm:$0xff]
    %v434 = vld [vmem:[#allocation8 + $0x6d0] sm:$0xff]
    %v435 = vld [vmem:[#allocation8 + $0x6d8] sm:$0xff]
    %v436 = vld [vmem:[#allocation8 + $0x6e0] sm:$0xff]
    %v437 = vld [vmem:[#allocation8 + $0x6e8] sm:$0xff]
    %v438 = vld [vmem:[#allocation8 + $0x6f0] sm:$0xff]
    %v439 = vld [vmem:[#allocation8 + $0x6f8] sm:$0xff]
    %v440 = vld [vmem:[#allocation8 + $0x700] sm:$0xff]
    %v441 = vld [vmem:[#allocation8 + $0x708] sm:$0xff]
    %v442 = vld [vmem:[#allocation8 + $0x710] sm:$0xff]
    %v443 = vld [vmem:[#allocation8 + $0x718] sm:$0xff]
    %v444 = vld [vmem:[#allocation8 + $0x720] sm:$0xff]
    %v445 = vld [vmem:[#allocation8 + $0x728] sm:$0xff]
    %v446 = vld [vmem:[#allocation8 + $0x730] sm:$0xff]
    %v447 = vld [vmem:[#allocation8 + $0x738] sm:$0xff]
    %v448 = vld [vmem:[#allocation8 + $0x740] sm:$0xff]
    %v449 = vld [vmem:[#allocation8 + $0x748] sm:$0xff]
    %v450 = vld [vmem:[#allocation8 + $0x750] sm:$0xff]
    %v451 = vld [vmem:[#allocation8 + $0x758] sm:$0xff]
    %v452 = vld [vmem:[#allocation8 + $0x760] sm:$0xff]
    %v453 = vld [vmem:[#allocation8 + $0x768] sm:$0xff]
    %v454 = vld [vmem:[#allocation8 + $0x770] sm:$0xff]
    %v455 = vld [vmem:[#allocation8 + $0x778] sm:$0xff]
    %v456 = vld [vmem:[#allocation8 + $0x780] sm:$0xff]
    %v457 = vld [vmem:[#allocation8 + $0x788] sm:$0xff]
    %v458 = vld [vmem:[#allocation8 + $0x790] sm:$0xff]
    %v459 = vld [vmem:[#allocation8 + $0x798] sm:$0xff]
    %v460 = vld [vmem:[#allocation8 + $0x7a0] sm:$0xff]
    %v461 = vld [vmem:[#allocation8 + $0x7a8] sm:$0xff]
    %v462 = vld [vmem:[#allocation8 + $0x7b0] sm:$0xff]
    %v463 = vld [vmem:[#allocation8 + $0x7b8] sm:$0xff]
    %v464 = vld [vmem:[#allocation8 + $0x7c0] sm:$0xff]
    %v465 = vld [vmem:[#allocation8 + $0x7c8] sm:$0xff]
    %v466 = vld [vmem:[#allocation8 + $0x7d0] sm:$0xff]
    %v467 = vld [vmem:[#allocation8 + $0x7d8] sm:$0xff]
    %v468 = vld [vmem:[#allocation8 + $0x7e0] sm:$0xff]
    %v469 = vld [vmem:[#allocation8 + $0x7e8] sm:$0xff]
    %v470 = vld [vmem:[#allocation8 + $0x7f0] sm:$0xff]
    %v471 = vld [vmem:[#allocation8 + $0x7f8] sm:$0xff]
    %v472 = vld [vmem:[#allocation10] sm:$0xff]
    %v474 = vperm.slane %v472, 0
    %v475 = vperm.slane %v472, 1
    %v476 = vperm.slane %v472, 2
    %v477 = vperm.slane %v472, 3
    %v478 = vperm.slane %v472, 4
    %v479 = vperm.slane %v472, 5
    %v480 = vperm.slane %v472, 6
    %v481 = vperm.slane %v472, 7
    %v746 = vunpack.c.l.b16 %v216
    %v747 = vunpack.c.h.b16 %v216
    %v748 = vunpack.c.l.b16 %v217
    %v749 = vunpack.c.h.b16 %v217
    %v750 = vunpack.c.l.b16 %v218
    %v751 = vunpack.c.h.b16 %v218
    %v752 = vunpack.c.l.b16 %v219
    %v753 = vunpack.c.h.b16 %v219
    %v754 = vunpack.c.l.b16 %v220
    %v755 = vunpack.c.h.b16 %v220
    %v756 = vunpack.c.l.b16 %v221
    %v757 = vunpack.c.h.b16 %v221
    %v758 = vunpack.c.l.b16 %v222
    %v759 = vunpack.c.h.b16 %v222
    %v760 = vunpack.c.l.b16 %v223
    %v761 = vunpack.c.h.b16 %v223
    %v762 = vunpack.c.l.b16 %v224
    %v763 = vunpack.c.h.b16 %v224
    %v764 = vunpack.c.l.b16 %v225
    %v765 = vunpack.c.h.b16 %v225
    %v766 = vunpack.c.l.b16 %v226
    %v767 = vunpack.c.h.b16 %v226
    %v768 = vunpack.c.l.b16 %v227
    %v769 = vunpack.c.h.b16 %v227
    %v770 = vunpack.c.l.b16 %v228
    %v771 = vunpack.c.h.b16 %v228
    %v772 = vunpack.c.l.b16 %v229
    %v773 = vunpack.c.h.b16 %v229
    %v774 = vunpack.c.l.b16 %v230
    %v775 = vunpack.c.h.b16 %v230
    %v776 = vunpack.c.l.b16 %v231
    %v777 = vunpack.c.h.b16 %v231
    %v778 = vunpack.c.l.b16 %v232
    %v779 = vunpack.c.h.b16 %v232
    %v780 = vunpack.c.l.b16 %v233
    %v781 = vunpack.c.h.b16 %v233
    %v782 = vunpack.c.l.b16 %v234
    %v783 = vunpack.c.h.b16 %v234
    %v784 = vunpack.c.l.b16 %v235
    %v785 = vunpack.c.h.b16 %v235
    %v786 = vunpack.c.l.b16 %v236
    %v787 = vunpack.c.h.b16 %v236
    %v788 = vunpack.c.l.b16 %v237
    %v789 = vunpack.c.h.b16 %v237
    %v790 = vunpack.c.l.b16 %v238
    %v791 = vunpack.c.h.b16 %v238
    %v792 = vunpack.c.l.b16 %v239
    %v793 = vunpack.c.h.b16 %v239
    %v794 = vunpack.c.l.b16 %v240
    %v795 = vunpack.c.h.b16 %v240
    %v796 = vunpack.c.l.b16 %v241
    %v797 = vunpack.c.h.b16 %v241
    %v798 = vunpack.c.l.b16 %v242
    %v799 = vunpack.c.h.b16 %v242
    %v800 = vunpack.c.l.b16 %v243
    %v801 = vunpack.c.h.b16 %v243
    %v802 = vunpack.c.l.b16 %v244
    %v803 = vunpack.c.h.b16 %v244
    %v804 = vunpack.c.l.b16 %v245
    %v805 = vunpack.c.h.b16 %v245
    %v806 = vunpack.c.l.b16 %v246
    %v807 = vunpack.c.h.b16 %v246
    %v808 = vunpack.c.l.b16 %v247
    %v809 = vunpack.c.h.b16 %v247
    %v810 = vunpack.c.l.b16 %v248
    %v811 = vunpack.c.h.b16 %v248
    %v812 = vunpack.c.l.b16 %v249
    %v813 = vunpack.c.h.b16 %v249
    %v814 = vunpack.c.l.b16 %v250
    %v815 = vunpack.c.h.b16 %v250
    %v816 = vunpack.c.l.b16 %v251
    %v817 = vunpack.c.h.b16 %v251
    %v818 = vunpack.c.l.b16 %v252
    %v819 = vunpack.c.h.b16 %v252
    %v820 = vunpack.c.l.b16 %v253
    %v821 = vunpack.c.h.b16 %v253
    %v822 = vunpack.c.l.b16 %v254
    %v823 = vunpack.c.h.b16 %v254
    %v824 = vunpack.c.l.b16 %v255
    %v825 = vunpack.c.h.b16 %v255
    %v826 = vunpack.c.l.b16 %v256
    %v827 = vunpack.c.h.b16 %v256
    %v828 = vunpack.c.l.b16 %v257
    %v829 = vunpack.c.h.b16 %v257
    %v830 = vunpack.c.l.b16 %v258
    %v831 = vunpack.c.h.b16 %v258
    %v832 = vunpack.c.l.b16 %v259
    %v833 = vunpack.c.h.b16 %v259
    %v834 = vunpack.c.l.b16 %v260
    %v835 = vunpack.c.h.b16 %v260
    %v836 = vunpack.c.l.b16 %v261
    %v837 = vunpack.c.h.b16 %v261
    %v838 = vunpack.c.l.b16 %v262
    %v839 = vunpack.c.h.b16 %v262
    %v840 = vunpack.c.l.b16 %v263
    %v841 = vunpack.c.h.b16 %v263
    %v842 = vunpack.c.l.b16 %v264
    %v843 = vunpack.c.h.b16 %v264
    %v844 = vunpack.c.l.b16 %v265
    %v845 = vunpack.c.h.b16 %v265
    %v846 = vunpack.c.l.b16 %v266
    %v847 = vunpack.c.h.b16 %v266
    %v848 = vunpack.c.l.b16 %v267
    %v849 = vunpack.c.h.b16 %v267
    %v850 = vunpack.c.l.b16 %v268
    %v851 = vunpack.c.h.b16 %v268
    %v852 = vunpack.c.l.b16 %v269
    %v853 = vunpack.c.h.b16 %v269
    %v854 = vunpack.c.l.b16 %v270
    %v855 = vunpack.c.h.b16 %v270
    %v856 = vunpack.c.l.b16 %v271
    %v857 = vunpack.c.h.b16 %v271
    %v858 = vunpack.c.l.b16 %v272
    %v859 = vunpack.c.h.b16 %v272
    %v860 = vunpack.c.l.b16 %v273
    %v861 = vunpack.c.h.b16 %v273
    %v862 = vunpack.c.l.b16 %v274
    %v863 = vunpack.c.h.b16 %v274
    %v864 = vunpack.c.l.b16 %v275
    %v865 = vunpack.c.h.b16 %v275
    %v866 = vunpack.c.l.b16 %v276
    %v867 = vunpack.c.h.b16 %v276
    %v868 = vunpack.c.l.b16 %v277
    %v869 = vunpack.c.h.b16 %v277
    %v870 = vunpack.c.l.b16 %v278
    %v871 = vunpack.c.h.b16 %v278
    %v872 = vunpack.c.l.b16 %v279
    %v873 = vunpack.c.h.b16 %v279
    %v874 = vunpack.c.l.b16 %v280
    %v875 = vunpack.c.h.b16 %v280
    %v876 = vunpack.c.l.b16 %v281
    %v877 = vunpack.c.h.b16 %v281
    %v878 = vunpack.c.l.b16 %v282
    %v879 = vunpack.c.h.b16 %v282
    %v880 = vunpack.c.l.b16 %v283
    %v881 = vunpack.c.h.b16 %v283
    %v882 = vunpack.c.l.b16 %v284
    %v883 = vunpack.c.h.b16 %v284
    %v884 = vunpack.c.l.b16 %v285
    %v885 = vunpack.c.h.b16 %v285
    %v886 = vunpack.c.l.b16 %v286
    %v887 = vunpack.c.h.b16 %v286
    %v888 = vunpack.c.l.b16 %v287
    %v889 = vunpack.c.h.b16 %v287
    %v890 = vunpack.c.l.b16 %v288
    %v891 = vunpack.c.h.b16 %v288
    %v892 = vunpack.c.l.b16 %v289
    %v893 = vunpack.c.h.b16 %v289
    %v894 = vunpack.c.l.b16 %v290
    %v895 = vunpack.c.h.b16 %v290
    %v896 = vunpack.c.l.b16 %v291
    %v897 = vunpack.c.h.b16 %v291
    %v898 = vunpack.c.l.b16 %v292
    %v899 = vunpack.c.h.b16 %v292
    %v900 = vunpack.c.l.b16 %v293
    %v901 = vunpack.c.h.b16 %v293
    %v902 = vunpack.c.l.b16 %v294
    %v903 = vunpack.c.h.b16 %v294
    %v904 = vunpack.c.l.b16 %v295
    %v905 = vunpack.c.h.b16 %v295
    %v906 = vunpack.c.l.b16 %v296
    %v907 = vunpack.c.h.b16 %v296
    %v908 = vunpack.c.l.b16 %v297
    %v909 = vunpack.c.h.b16 %v297
    %v910 = vunpack.c.l.b16 %v298
    %v911 = vunpack.c.h.b16 %v298
    %v912 = vunpack.c.l.b16 %v299
    %v913 = vunpack.c.h.b16 %v299
    %v914 = vunpack.c.l.b16 %v300
    %v915 = vunpack.c.h.b16 %v300
    %v916 = vunpack.c.l.b16 %v301
    %v917 = vunpack.c.h.b16 %v301
    %v918 = vunpack.c.l.b16 %v302
    %v919 = vunpack.c.h.b16 %v302
    %v920 = vunpack.c.l.b16 %v303
    %v921 = vunpack.c.h.b16 %v303
    %v922 = vunpack.c.l.b16 %v304
    %v923 = vunpack.c.h.b16 %v304
    %v924 = vunpack.c.l.b16 %v305
    %v925 = vunpack.c.h.b16 %v305
    %v926 = vunpack.c.l.b16 %v306
    %v927 = vunpack.c.h.b16 %v306
    %v928 = vunpack.c.l.b16 %v307
    %v929 = vunpack.c.h.b16 %v307
    %v930 = vunpack.c.l.b16 %v308
    %v931 = vunpack.c.h.b16 %v308
    %v932 = vunpack.c.l.b16 %v309
    %v933 = vunpack.c.h.b16 %v309
    %v934 = vunpack.c.l.b16 %v310
    %v935 = vunpack.c.h.b16 %v310
    %v936 = vunpack.c.l.b16 %v311
    %v937 = vunpack.c.h.b16 %v311
    %v938 = vunpack.c.l.b16 %v312
    %v939 = vunpack.c.h.b16 %v312
    %v940 = vunpack.c.l.b16 %v313
    %v941 = vunpack.c.h.b16 %v313
    %v942 = vunpack.c.l.b16 %v314
    %v943 = vunpack.c.h.b16 %v314
    %v944 = vunpack.c.l.b16 %v315
    %v945 = vunpack.c.h.b16 %v315
    %v946 = vunpack.c.l.b16 %v316
    %v947 = vunpack.c.h.b16 %v316
    %v948 = vunpack.c.l.b16 %v317
    %v949 = vunpack.c.h.b16 %v317
    %v950 = vunpack.c.l.b16 %v318
    %v951 = vunpack.c.h.b16 %v318
    %v952 = vunpack.c.l.b16 %v319
    %v953 = vunpack.c.h.b16 %v319
    %v954 = vunpack.c.l.b16 %v320
    %v955 = vunpack.c.h.b16 %v320
    %v956 = vunpack.c.l.b16 %v321
    %v957 = vunpack.c.h.b16 %v321
    %v958 = vunpack.c.l.b16 %v322
    %v959 = vunpack.c.h.b16 %v322
    %v960 = vunpack.c.l.b16 %v323
    %v961 = vunpack.c.h.b16 %v323
    %v962 = vunpack.c.l.b16 %v324
    %v963 = vunpack.c.h.b16 %v324
    %v964 = vunpack.c.l.b16 %v325
    %v965 = vunpack.c.h.b16 %v325
    %v966 = vunpack.c.l.b16 %v326
    %v967 = vunpack.c.h.b16 %v326
    %v968 = vunpack.c.l.b16 %v327
    %v969 = vunpack.c.h.b16 %v327
    %v970 = vunpack.c.l.b16 %v328
    %v971 = vunpack.c.h.b16 %v328
    %v972 = vunpack.c.l.b16 %v329
    %v973 = vunpack.c.h.b16 %v329
    %v974 = vunpack.c.l.b16 %v330
    %v975 = vunpack.c.h.b16 %v330
    %v976 = vunpack.c.l.b16 %v331
    %v977 = vunpack.c.h.b16 %v331
    %v978 = vunpack.c.l.b16 %v332
    %v979 = vunpack.c.h.b16 %v332
    %v980 = vunpack.c.l.b16 %v333
    %v981 = vunpack.c.h.b16 %v333
    %v982 = vunpack.c.l.b16 %v334
    %v983 = vunpack.c.h.b16 %v334
    %v984 = vunpack.c.l.b16 %v335
    %v985 = vunpack.c.h.b16 %v335
    %v986 = vunpack.c.l.b16 %v336
    %v987 = vunpack.c.h.b16 %v336
    %v988 = vunpack.c.l.b16 %v337
    %v989 = vunpack.c.h.b16 %v337
    %v990 = vunpack.c.l.b16 %v338
    %v991 = vunpack.c.h.b16 %v338
    %v992 = vunpack.c.l.b16 %v339
    %v993 = vunpack.c.h.b16 %v339
    %v994 = vunpack.c.l.b16 %v340
    %v995 = vunpack.c.h.b16 %v340
    %v996 = vunpack.c.l.b16 %v341
    %v997 = vunpack.c.h.b16 %v341
    %v998 = vunpack.c.l.b16 %v342
    %v999 = vunpack.c.h.b16 %v342
    %v1000 = vunpack.c.l.b16 %v343
    %v1001 = vunpack.c.h.b16 %v343
    %v1002 = vunpack.c.l.b16 %v344
    %v1003 = vunpack.c.h.b16 %v344
    %v1004 = vunpack.c.l.b16 %v345
    %v1005 = vunpack.c.h.b16 %v345
    %v1006 = vunpack.c.l.b16 %v346
    %v1007 = vunpack.c.h.b16 %v346
    %v1008 = vunpack.c.l.b16 %v347
    %v1009 = vunpack.c.h.b16 %v347
    %v1010 = vunpack.c.l.b16 %v348
    %v1011 = vunpack.c.h.b16 %v348
    %v1012 = vunpack.c.l.b16 %v349
    %v1013 = vunpack.c.h.b16 %v349
    %v1014 = vunpack.c.l.b16 %v350
    %v1015 = vunpack.c.h.b16 %v350
    %v1016 = vunpack.c.l.b16 %v351
    %v1017 = vunpack.c.h.b16 %v351
    %v1018 = vunpack.c.l.b16 %v352
    %v1019 = vunpack.c.h.b16 %v352
    %v1020 = vunpack.c.l.b16 %v353
    %v1021 = vunpack.c.h.b16 %v353
    %v1022 = vunpack.c.l.b16 %v354
    %v1023 = vunpack.c.h.b16 %v354
    %v1024 = vunpack.c.l.b16 %v355
    %v1025 = vunpack.c.h.b16 %v355
    %v1026 = vunpack.c.l.b16 %v356
    %v1027 = vunpack.c.h.b16 %v356
    %v1028 = vunpack.c.l.b16 %v357
    %v1029 = vunpack.c.h.b16 %v357
    %v1030 = vunpack.c.l.b16 %v358
    %v1031 = vunpack.c.h.b16 %v358
    %v1032 = vunpack.c.l.b16 %v359
    %v1033 = vunpack.c.h.b16 %v359
    %v1034 = vunpack.c.l.b16 %v360
    %v1035 = vunpack.c.h.b16 %v360
    %v1036 = vunpack.c.l.b16 %v361
    %v1037 = vunpack.c.h.b16 %v361
    %v1038 = vunpack.c.l.b16 %v362
    %v1039 = vunpack.c.h.b16 %v362
    %v1040 = vunpack.c.l.b16 %v363
    %v1041 = vunpack.c.h.b16 %v363
    %v1042 = vunpack.c.l.b16 %v364
    %v1043 = vunpack.c.h.b16 %v364
    %v1044 = vunpack.c.l.b16 %v365
    %v1045 = vunpack.c.h.b16 %v365
    %v1046 = vunpack.c.l.b16 %v366
    %v1047 = vunpack.c.h.b16 %v366
    %v1048 = vunpack.c.l.b16 %v367
    %v1049 = vunpack.c.h.b16 %v367
    %v1050 = vunpack.c.l.b16 %v368
    %v1051 = vunpack.c.h.b16 %v368
    %v1052 = vunpack.c.l.b16 %v369
    %v1053 = vunpack.c.h.b16 %v369
    %v1054 = vunpack.c.l.b16 %v370
    %v1055 = vunpack.c.h.b16 %v370
    %v1056 = vunpack.c.l.b16 %v371
    %v1057 = vunpack.c.h.b16 %v371
    %v1058 = vunpack.c.l.b16 %v372
    %v1059 = vunpack.c.h.b16 %v372
    %v1060 = vunpack.c.l.b16 %v373
    %v1061 = vunpack.c.h.b16 %v373
    %v1062 = vunpack.c.l.b16 %v374
    %v1063 = vunpack.c.h.b16 %v374
    %v1064 = vunpack.c.l.b16 %v375
    %v1065 = vunpack.c.h.b16 %v375
    %v1066 = vunpack.c.l.b16 %v376
    %v1067 = vunpack.c.h.b16 %v376
    %v1068 = vunpack.c.l.b16 %v377
    %v1069 = vunpack.c.h.b16 %v377
    %v1070 = vunpack.c.l.b16 %v378
    %v1071 = vunpack.c.h.b16 %v378
    %v1072 = vunpack.c.l.b16 %v379
    %v1073 = vunpack.c.h.b16 %v379
    %v1074 = vunpack.c.l.b16 %v380
    %v1075 = vunpack.c.h.b16 %v380
    %v1076 = vunpack.c.l.b16 %v381
    %v1077 = vunpack.c.h.b16 %v381
    %v1078 = vunpack.c.l.b16 %v382
    %v1079 = vunpack.c.h.b16 %v382
    %v1080 = vunpack.c.l.b16 %v383
    %v1081 = vunpack.c.h.b16 %v383
    %v1082 = vunpack.c.l.b16 %v384
    %v1083 = vunpack.c.h.b16 %v384
    %v1084 = vunpack.c.l.b16 %v385
    %v1085 = vunpack.c.h.b16 %v385
    %v1086 = vunpack.c.l.b16 %v386
    %v1087 = vunpack.c.h.b16 %v386
    %v1088 = vunpack.c.l.b16 %v387
    %v1089 = vunpack.c.h.b16 %v387
    %v1090 = vunpack.c.l.b16 %v388
    %v1091 = vunpack.c.h.b16 %v388
    %v1092 = vunpack.c.l.b16 %v389
    %v1093 = vunpack.c.h.b16 %v389
    %v1094 = vunpack.c.l.b16 %v390
    %v1095 = vunpack.c.h.b16 %v390
    %v1096 = vunpack.c.l.b16 %v391
    %v1097 = vunpack.c.h.b16 %v391
    %v1098 = vunpack.c.l.b16 %v392
    %v1099 = vunpack.c.h.b16 %v392
    %v1100 = vunpack.c.l.b16 %v393
    %v1101 = vunpack.c.h.b16 %v393
    %v1102 = vunpack.c.l.b16 %v394
    %v1103 = vunpack.c.h.b16 %v394
    %v1104 = vunpack.c.l.b16 %v395
    %v1105 = vunpack.c.h.b16 %v395
    %v1106 = vunpack.c.l.b16 %v396
    %v1107 = vunpack.c.h.b16 %v396
    %v1108 = vunpack.c.l.b16 %v397
    %v1109 = vunpack.c.h.b16 %v397
    %v1110 = vunpack.c.l.b16 %v398
    %v1111 = vunpack.c.h.b16 %v398
    %v1112 = vunpack.c.l.b16 %v399
    %v1113 = vunpack.c.h.b16 %v399
    %v1114 = vunpack.c.l.b16 %v400
    %v1115 = vunpack.c.h.b16 %v400
    %v1116 = vunpack.c.l.b16 %v401
    %v1117 = vunpack.c.h.b16 %v401
    %v1118 = vunpack.c.l.b16 %v402
    %v1119 = vunpack.c.h.b16 %v402
    %v1120 = vunpack.c.l.b16 %v403
    %v1121 = vunpack.c.h.b16 %v403
    %v1122 = vunpack.c.l.b16 %v404
    %v1123 = vunpack.c.h.b16 %v404
    %v1124 = vunpack.c.l.b16 %v405
    %v1125 = vunpack.c.h.b16 %v405
    %v1126 = vunpack.c.l.b16 %v406
    %v1127 = vunpack.c.h.b16 %v406
    %v1128 = vunpack.c.l.b16 %v407
    %v1129 = vunpack.c.h.b16 %v407
    %v1130 = vunpack.c.l.b16 %v408
    %v1131 = vunpack.c.h.b16 %v408
    %v1132 = vunpack.c.l.b16 %v409
    %v1133 = vunpack.c.h.b16 %v409
    %v1134 = vunpack.c.l.b16 %v410
    %v1135 = vunpack.c.h.b16 %v410
    %v1136 = vunpack.c.l.b16 %v411
    %v1137 = vunpack.c.h.b16 %v411
    %v1138 = vunpack.c.l.b16 %v412
    %v1139 = vunpack.c.h.b16 %v412
    %v1140 = vunpack.c.l.b16 %v413
    %v1141 = vunpack.c.h.b16 %v413
    %v1142 = vunpack.c.l.b16 %v414
    %v1143 = vunpack.c.h.b16 %v414
    %v1144 = vunpack.c.l.b16 %v415
    %v1145 = vunpack.c.h.b16 %v415
    %v1146 = vunpack.c.l.b16 %v416
    %v1147 = vunpack.c.h.b16 %v416
    %v1148 = vunpack.c.l.b16 %v417
    %v1149 = vunpack.c.h.b16 %v417
    %v1150 = vunpack.c.l.b16 %v418
    %v1151 = vunpack.c.h.b16 %v418
    %v1152 = vunpack.c.l.b16 %v419
    %v1153 = vunpack.c.h.b16 %v419
    %v1154 = vunpack.c.l.b16 %v420
    %v1155 = vunpack.c.h.b16 %v420
    %v1156 = vunpack.c.l.b16 %v421
    %v1157 = vunpack.c.h.b16 %v421
    %v1158 = vunpack.c.l.b16 %v422
    %v1159 = vunpack.c.h.b16 %v422
    %v1160 = vunpack.c.l.b16 %v423
    %v1161 = vunpack.c.h.b16 %v423
    %v1162 = vunpack.c.l.b16 %v424
    %v1163 = vunpack.c.h.b16 %v424
    %v1164 = vunpack.c.l.b16 %v425
    %v1165 = vunpack.c.h.b16 %v425
    %v1166 = vunpack.c.l.b16 %v426
    %v1167 = vunpack.c.h.b16 %v426
    %v1168 = vunpack.c.l.b16 %v427
    %v1169 = vunpack.c.h.b16 %v427
    %v1170 = vunpack.c.l.b16 %v428
    %v1171 = vunpack.c.h.b16 %v428
    %v1172 = vunpack.c.l.b16 %v429
    %v1173 = vunpack.c.h.b16 %v429
    %v1174 = vunpack.c.l.b16 %v430
    %v1175 = vunpack.c.h.b16 %v430
    %v1176 = vunpack.c.l.b16 %v431
    %v1177 = vunpack.c.h.b16 %v431
    %v1178 = vunpack.c.l.b16 %v432
    %v1179 = vunpack.c.h.b16 %v432
    %v1180 = vunpack.c.l.b16 %v433
    %v1181 = vunpack.c.h.b16 %v433
    %v1182 = vunpack.c.l.b16 %v434
    %v1183 = vunpack.c.h.b16 %v434
    %v1184 = vunpack.c.l.b16 %v435
    %v1185 = vunpack.c.h.b16 %v435
    %v1186 = vunpack.c.l.b16 %v436
    %v1187 = vunpack.c.h.b16 %v436
    %v1188 = vunpack.c.l.b16 %v437
    %v1189 = vunpack.c.h.b16 %v437
    %v1190 = vunpack.c.l.b16 %v438
    %v1191 = vunpack.c.h.b16 %v438
    %v1192 = vunpack.c.l.b16 %v439
    %v1193 = vunpack.c.h.b16 %v439
    %v1194 = vunpack.c.l.b16 %v440
    %v1195 = vunpack.c.h.b16 %v440
    %v1196 = vunpack.c.l.b16 %v441
    %v1197 = vunpack.c.h.b16 %v441
    %v1198 = vunpack.c.l.b16 %v442
    %v1199 = vunpack.c.h.b16 %v442
    %v1200 = vunpack.c.l.b16 %v443
    %v1201 = vunpack.c.h.b16 %v443
    %v1202 = vunpack.c.l.b16 %v444
    %v1203 = vunpack.c.h.b16 %v444
    %v1204 = vunpack.c.l.b16 %v445
    %v1205 = vunpack.c.h.b16 %v445
    %v1206 = vunpack.c.l.b16 %v446
    %v1207 = vunpack.c.h.b16 %v446
    %v1208 = vunpack.c.l.b16 %v447
    %v1209 = vunpack.c.h.b16 %v447
    %v1210 = vunpack.c.l.b16 %v448
    %v1211 = vunpack.c.h.b16 %v448
    %v1212 = vunpack.c.l.b16 %v449
    %v1213 = vunpack.c.h.b16 %v449
    %v1214 = vunpack.c.l.b16 %v450
    %v1215 = vunpack.c.h.b16 %v450
    %v1216 = vunpack.c.l.b16 %v451
    %v1217 = vunpack.c.h.b16 %v451
    %v1218 = vunpack.c.l.b16 %v452
    %v1219 = vunpack.c.h.b16 %v452
    %v1220 = vunpack.c.l.b16 %v453
    %v1221 = vunpack.c.h.b16 %v453
    %v1222 = vunpack.c.l.b16 %v454
    %v1223 = vunpack.c.h.b16 %v454
    %v1224 = vunpack.c.l.b16 %v455
    %v1225 = vunpack.c.h.b16 %v455
    %v1226 = vunpack.c.l.b16 %v456
    %v1227 = vunpack.c.h.b16 %v456
    %v1228 = vunpack.c.l.b16 %v457
    %v1229 = vunpack.c.h.b16 %v457
    %v1230 = vunpack.c.l.b16 %v458
    %v1231 = vunpack.c.h.b16 %v458
    %v1232 = vunpack.c.l.b16 %v459
    %v1233 = vunpack.c.h.b16 %v459
    %v1234 = vunpack.c.l.b16 %v460
    %v1235 = vunpack.c.h.b16 %v460
    %v1236 = vunpack.c.l.b16 %v461
    %v1237 = vunpack.c.h.b16 %v461
    %v1238 = vunpack.c.l.b16 %v462
    %v1239 = vunpack.c.h.b16 %v462
    %v1240 = vunpack.c.l.b16 %v463
    %v1241 = vunpack.c.h.b16 %v463
    %v1242 = vunpack.c.l.b16 %v464
    %v1243 = vunpack.c.h.b16 %v464
    %v1244 = vunpack.c.l.b16 %v465
    %v1245 = vunpack.c.h.b16 %v465
    %v1246 = vunpack.c.l.b16 %v466
    %v1247 = vunpack.c.h.b16 %v466
    %v1248 = vunpack.c.l.b16 %v467
    %v1249 = vunpack.c.h.b16 %v467
    %v1250 = vunpack.c.l.b16 %v468
    %v1251 = vunpack.c.h.b16 %v468
    %v1252 = vunpack.c.l.b16 %v469
    %v1253 = vunpack.c.h.b16 %v469
    %v1254 = vunpack.c.l.b16 %v470
    %v1255 = vunpack.c.h.b16 %v470
    %v1256 = vunpack.c.l.b16 %v471
    %v1257 = vunpack.c.h.b16 %v471
    %v1258 = vpack.c.b16 %v754, %v746
    %v1259 = vpack.c.b16 %v755, %v747
    %v1260 = vpack.c.b16 %v756, %v748
    %v1261 = vpack.c.b16 %v757, %v749
    %v1262 = vpack.c.b16 %v758, %v750
    %v1263 = vpack.c.b16 %v759, %v751
    %v1264 = vpack.c.b16 %v760, %v752
    %v1265 = vpack.c.b16 %v761, %v753
    %v1266 = vpack.c.b16 %v770, %v762
    %v1267 = vpack.c.b16 %v771, %v763
    %v1268 = vpack.c.b16 %v772, %v764
    %v1269 = vpack.c.b16 %v773, %v765
    %v1270 = vpack.c.b16 %v774, %v766
    %v1271 = vpack.c.b16 %v775, %v767
    %v1272 = vpack.c.b16 %v776, %v768
    %v1273 = vpack.c.b16 %v777, %v769
    %v1274 = vpack.c.b16 %v786, %v778
    %v1275 = vpack.c.b16 %v787, %v779
    %v1276 = vpack.c.b16 %v788, %v780
    %v1277 = vpack.c.b16 %v789, %v781
    %v1278 = vpack.c.b16 %v790, %v782
    %v1279 = vpack.c.b16 %v791, %v783
    %v1280 = vpack.c.b16 %v792, %v784
    %v1281 = vpack.c.b16 %v793, %v785
    %v1282 = vpack.c.b16 %v802, %v794
    %v1283 = vpack.c.b16 %v803, %v795
    %v1284 = vpack.c.b16 %v804, %v796
    %v1285 = vpack.c.b16 %v805, %v797
    %v1286 = vpack.c.b16 %v806, %v798
    %v1287 = vpack.c.b16 %v807, %v799
    %v1288 = vpack.c.b16 %v808, %v800
    %v1289 = vpack.c.b16 %v809, %v801
    %v1290 = vpack.c.b16 %v818, %v810
    %v1291 = vpack.c.b16 %v819, %v811
    %v1292 = vpack.c.b16 %v820, %v812
    %v1293 = vpack.c.b16 %v821, %v813
    %v1294 = vpack.c.b16 %v822, %v814
    %v1295 = vpack.c.b16 %v823, %v815
    %v1296 = vpack.c.b16 %v824, %v816
    %v1297 = vpack.c.b16 %v825, %v817
    %v1298 = vpack.c.b16 %v834, %v826
    %v1299 = vpack.c.b16 %v835, %v827
    %v1300 = vpack.c.b16 %v836, %v828
    %v1301 = vpack.c.b16 %v837, %v829
    %v1302 = vpack.c.b16 %v838, %v830
    %v1303 = vpack.c.b16 %v839, %v831
    %v1304 = vpack.c.b16 %v840, %v832
    %v1305 = vpack.c.b16 %v841, %v833
    %v1306 = vpack.c.b16 %v850, %v842
    %v1307 = vpack.c.b16 %v851, %v843
    %v1308 = vpack.c.b16 %v852, %v844
    %v1309 = vpack.c.b16 %v853, %v845
    %v1310 = vpack.c.b16 %v854, %v846
    %v1311 = vpack.c.b16 %v855, %v847
    %v1312 = vpack.c.b16 %v856, %v848
    %v1313 = vpack.c.b16 %v857, %v849
    %v1314 = vpack.c.b16 %v866, %v858
    %v1315 = vpack.c.b16 %v867, %v859
    %v1316 = vpack.c.b16 %v868, %v860
    %v1317 = vpack.c.b16 %v869, %v861
    %v1318 = vpack.c.b16 %v870, %v862
    %v1319 = vpack.c.b16 %v871, %v863
    %v1320 = vpack.c.b16 %v872, %v864
    %v1321 = vpack.c.b16 %v873, %v865
    %v1322 = vpack.c.b16 %v882, %v874
    %v1323 = vpack.c.b16 %v883, %v875
    %v1324 = vpack.c.b16 %v884, %v876
    %v1325 = vpack.c.b16 %v885, %v877
    %v1326 = vpack.c.b16 %v886, %v878
    %v1327 = vpack.c.b16 %v887, %v879
    %v1328 = vpack.c.b16 %v888, %v880
    %v1329 = vpack.c.b16 %v889, %v881
    %v1330 = vpack.c.b16 %v898, %v890
    %v1331 = vpack.c.b16 %v899, %v891
    %v1332 = vpack.c.b16 %v900, %v892
    %v1333 = vpack.c.b16 %v901, %v893
    %v1334 = vpack.c.b16 %v902, %v894
    %v1335 = vpack.c.b16 %v903, %v895
    %v1336 = vpack.c.b16 %v904, %v896
    %v1337 = vpack.c.b16 %v905, %v897
    %v1338 = vpack.c.b16 %v914, %v906
    %v1339 = vpack.c.b16 %v915, %v907
    %v1340 = vpack.c.b16 %v916, %v908
    %v1341 = vpack.c.b16 %v917, %v909
    %v1342 = vpack.c.b16 %v918, %v910
    %v1343 = vpack.c.b16 %v919, %v911
    %v1344 = vpack.c.b16 %v920, %v912
    %v1345 = vpack.c.b16 %v921, %v913
    %v1346 = vpack.c.b16 %v930, %v922
    %v1347 = vpack.c.b16 %v931, %v923
    %v1348 = vpack.c.b16 %v932, %v924
    %v1349 = vpack.c.b16 %v933, %v925
    %v1350 = vpack.c.b16 %v934, %v926
    %v1351 = vpack.c.b16 %v935, %v927
    %v1352 = vpack.c.b16 %v936, %v928
    %v1353 = vpack.c.b16 %v937, %v929
    %v1354 = vpack.c.b16 %v946, %v938
    %v1355 = vpack.c.b16 %v947, %v939
    %v1356 = vpack.c.b16 %v948, %v940
    %v1357 = vpack.c.b16 %v949, %v941
    %v1358 = vpack.c.b16 %v950, %v942
    %v1359 = vpack.c.b16 %v951, %v943
    %v1360 = vpack.c.b16 %v952, %v944
    %v1361 = vpack.c.b16 %v953, %v945
    %v1362 = vpack.c.b16 %v962, %v954
    %v1363 = vpack.c.b16 %v963, %v955
    %v1364 = vpack.c.b16 %v964, %v956
    %v1365 = vpack.c.b16 %v965, %v957
    %v1366 = vpack.c.b16 %v966, %v958
    %v1367 = vpack.c.b16 %v967, %v959
    %v1368 = vpack.c.b16 %v968, %v960
    %v1369 = vpack.c.b16 %v969, %v961
    %v1370 = vpack.c.b16 %v978, %v970
    %v1371 = vpack.c.b16 %v979, %v971
    %v1372 = vpack.c.b16 %v980, %v972
    %v1373 = vpack.c.b16 %v981, %v973
    %v1374 = vpack.c.b16 %v982, %v974
    %v1375 = vpack.c.b16 %v983, %v975
    %v1376 = vpack.c.b16 %v984, %v976
    %v1377 = vpack.c.b16 %v985, %v977
    %v1378 = vpack.c.b16 %v994, %v986
    %v1379 = vpack.c.b16 %v995, %v987
    %v1380 = vpack.c.b16 %v996, %v988
    %v1381 = vpack.c.b16 %v997, %v989
    %v1382 = vpack.c.b16 %v998, %v990
    %v1383 = vpack.c.b16 %v999, %v991
    %v1384 = vpack.c.b16 %v1000, %v992
    %v1385 = vpack.c.b16 %v1001, %v993
    %v1386 = vpack.c.b16 %v1010, %v1002
    %v1387 = vpack.c.b16 %v1011, %v1003
    %v1388 = vpack.c.b16 %v1012, %v1004
    %v1389 = vpack.c.b16 %v1013, %v1005
    %v1390 = vpack.c.b16 %v1014, %v1006
    %v1391 = vpack.c.b16 %v1015, %v1007
    %v1392 = vpack.c.b16 %v1016, %v1008
    %v1393 = vpack.c.b16 %v1017, %v1009
    %v1394 = vpack.c.b16 %v1026, %v1018
    %v1395 = vpack.c.b16 %v1027, %v1019
    %v1396 = vpack.c.b16 %v1028, %v1020
    %v1397 = vpack.c.b16 %v1029, %v1021
    %v1398 = vpack.c.b16 %v1030, %v1022
    %v1399 = vpack.c.b16 %v1031, %v1023
    %v1400 = vpack.c.b16 %v1032, %v1024
    %v1401 = vpack.c.b16 %v1033, %v1025
    %v1402 = vpack.c.b16 %v1042, %v1034
    %v1403 = vpack.c.b16 %v1043, %v1035
    %v1404 = vpack.c.b16 %v1044, %v1036
    %v1405 = vpack.c.b16 %v1045, %v1037
    %v1406 = vpack.c.b16 %v1046, %v1038
    %v1407 = vpack.c.b16 %v1047, %v1039
    %v1408 = vpack.c.b16 %v1048, %v1040
    %v1409 = vpack.c.b16 %v1049, %v1041
    %v1410 = vpack.c.b16 %v1058, %v1050
    %v1411 = vpack.c.b16 %v1059, %v1051
    %v1412 = vpack.c.b16 %v1060, %v1052
    %v1413 = vpack.c.b16 %v1061, %v1053
    %v1414 = vpack.c.b16 %v1062, %v1054
    %v1415 = vpack.c.b16 %v1063, %v1055
    %v1416 = vpack.c.b16 %v1064, %v1056
    %v1417 = vpack.c.b16 %v1065, %v1057
    %v1418 = vpack.c.b16 %v1074, %v1066
    %v1419 = vpack.c.b16 %v1075, %v1067
    %v1420 = vpack.c.b16 %v1076, %v1068
    %v1421 = vpack.c.b16 %v1077, %v1069
    %v1422 = vpack.c.b16 %v1078, %v1070
    %v1423 = vpack.c.b16 %v1079, %v1071
    %v1424 = vpack.c.b16 %v1080, %v1072
    %v1425 = vpack.c.b16 %v1081, %v1073
    %v1426 = vpack.c.b16 %v1090, %v1082
    %v1427 = vpack.c.b16 %v1091, %v1083
    %v1428 = vpack.c.b16 %v1092, %v1084
    %v1429 = vpack.c.b16 %v1093, %v1085
    %v1430 = vpack.c.b16 %v1094, %v1086
    %v1431 = vpack.c.b16 %v1095, %v1087
    %v1432 = vpack.c.b16 %v1096, %v1088
    %v1433 = vpack.c.b16 %v1097, %v1089
    %v1434 = vpack.c.b16 %v1106, %v1098
    %v1435 = vpack.c.b16 %v1107, %v1099
    %v1436 = vpack.c.b16 %v1108, %v1100
    %v1437 = vpack.c.b16 %v1109, %v1101
    %v1438 = vpack.c.b16 %v1110, %v1102
    %v1439 = vpack.c.b16 %v1111, %v1103
    %v1440 = vpack.c.b16 %v1112, %v1104
    %v1441 = vpack.c.b16 %v1113, %v1105
    %v1442 = vpack.c.b16 %v1122, %v1114
    %v1443 = vpack.c.b16 %v1123, %v1115
    %v1444 = vpack.c.b16 %v1124, %v1116
    %v1445 = vpack.c.b16 %v1125, %v1117
    %v1446 = vpack.c.b16 %v1126, %v1118
    %v1447 = vpack.c.b16 %v1127, %v1119
    %v1448 = vpack.c.b16 %v1128, %v1120
    %v1449 = vpack.c.b16 %v1129, %v1121
    %v1450 = vpack.c.b16 %v1138, %v1130
    %v1451 = vpack.c.b16 %v1139, %v1131
    %v1452 = vpack.c.b16 %v1140, %v1132
    %v1453 = vpack.c.b16 %v1141, %v1133
    %v1454 = vpack.c.b16 %v1142, %v1134
    %v1455 = vpack.c.b16 %v1143, %v1135
    %v1456 = vpack.c.b16 %v1144, %v1136
    %v1457 = vpack.c.b16 %v1145, %v1137
    %v1458 = vpack.c.b16 %v1154, %v1146
    %v1459 = vpack.c.b16 %v1155, %v1147
    %v1460 = vpack.c.b16 %v1156, %v1148
    %v1461 = vpack.c.b16 %v1157, %v1149
    %v1462 = vpack.c.b16 %v1158, %v1150
    %v1463 = vpack.c.b16 %v1159, %v1151
    %v1464 = vpack.c.b16 %v1160, %v1152
    %v1465 = vpack.c.b16 %v1161, %v1153
    %v1466 = vpack.c.b16 %v1170, %v1162
    %v1467 = vpack.c.b16 %v1171, %v1163
    %v1468 = vpack.c.b16 %v1172, %v1164
    %v1469 = vpack.c.b16 %v1173, %v1165
    %v1470 = vpack.c.b16 %v1174, %v1166
    %v1471 = vpack.c.b16 %v1175, %v1167
    %v1472 = vpack.c.b16 %v1176, %v1168
    %v1473 = vpack.c.b16 %v1177, %v1169
    %v1474 = vpack.c.b16 %v1186, %v1178
    %v1475 = vpack.c.b16 %v1187, %v1179
    %v1476 = vpack.c.b16 %v1188, %v1180
    %v1477 = vpack.c.b16 %v1189, %v1181
    %v1478 = vpack.c.b16 %v1190, %v1182
    %v1479 = vpack.c.b16 %v1191, %v1183
    %v1480 = vpack.c.b16 %v1192, %v1184
    %v1481 = vpack.c.b16 %v1193, %v1185
    %v1482 = vpack.c.b16 %v1202, %v1194
    %v1483 = vpack.c.b16 %v1203, %v1195
    %v1484 = vpack.c.b16 %v1204, %v1196
    %v1485 = vpack.c.b16 %v1205, %v1197
    %v1486 = vpack.c.b16 %v1206, %v1198
    %v1487 = vpack.c.b16 %v1207, %v1199
    %v1488 = vpack.c.b16 %v1208, %v1200
    %v1489 = vpack.c.b16 %v1209, %v1201
    %v1490 = vpack.c.b16 %v1218, %v1210
    %v1491 = vpack.c.b16 %v1219, %v1211
    %v1492 = vpack.c.b16 %v1220, %v1212
    %v1493 = vpack.c.b16 %v1221, %v1213
    %v1494 = vpack.c.b16 %v1222, %v1214
    %v1495 = vpack.c.b16 %v1223, %v1215
    %v1496 = vpack.c.b16 %v1224, %v1216
    %v1497 = vpack.c.b16 %v1225, %v1217
    %v1498 = vpack.c.b16 %v1234, %v1226
    %v1499 = vpack.c.b16 %v1235, %v1227
    %v1500 = vpack.c.b16 %v1236, %v1228
    %v1501 = vpack.c.b16 %v1237, %v1229
    %v1502 = vpack.c.b16 %v1238, %v1230
    %v1503 = vpack.c.b16 %v1239, %v1231
    %v1504 = vpack.c.b16 %v1240, %v1232
    %v1505 = vpack.c.b16 %v1241, %v1233
    %v1506 = vpack.c.b16 %v1250, %v1242
    %v1507 = vpack.c.b16 %v1251, %v1243
    %v1508 = vpack.c.b16 %v1252, %v1244
    %v1509 = vpack.c.b16 %v1253, %v1245
    %v1510 = vpack.c.b16 %v1254, %v1246
    %v1511 = vpack.c.b16 %v1255, %v1247
    %v1512 = vpack.c.b16 %v1256, %v1248
    %v1513 = vpack.c.b16 %v1257, %v1249
    %1770 = vmatpush.bf16.msra.mxu0 %v1314
    %1771 = vmatpush.bf16.msra.mxu0 %v1306
    %1772 = vmatpush.bf16.msra.mxu0 %v1298
    %1773 = vmatpush.bf16.msra.mxu0 %v1290
    %1774 = vmatpush.bf16.msra.mxu0 %v1282
    %1775 = vmatpush.bf16.msra.mxu0 %v1274
    %1776 = vmatpush.bf16.msra.mxu0 %v1266
    %1777 = vmatpush.bf16.msra.mxu0 %v1258
    %1778 = vmatmul.bf16.gmra.mxu0 %v212
    %v1779 = vpop.f32.mrf.mxu0
    %v1780 = vadd.f32 %v474, %v1779
    %v1781 = vpop.f32.mrf.mxu0
    %1782 = vdwg.mxu0
    %1783 = vmatpush.bf16.msra.mxu0 %v1378
    %1784 = vmatpush.bf16.msra.mxu0 %v1370
    %1785 = vmatpush.bf16.msra.mxu0 %v1362
    %1786 = vmatpush.bf16.msra.mxu0 %v1354
    %1787 = vmatpush.bf16.msra.mxu0 %v1346
    %1788 = vmatpush.bf16.msra.mxu0 %v1338
    %1789 = vmatpush.bf16.msra.mxu0 %v1330
    %1790 = vmatpush.bf16.msra.mxu0 %v1322
    %1791 = vmatmul.bf16.gmra.mxu0 %v213
    %v1792 = vpop.f32.mrf.mxu0
    %v1793 = vadd.f32 %v1780, %v1792
    %v1794 = vpop.f32.mrf.mxu0
    %1795 = vdwg.mxu0
    %1796 = vmatpush.bf16.msra.mxu0 %v1442
    %1797 = vmatpush.bf16.msra.mxu0 %v1434
    %1798 = vmatpush.bf16.msra.mxu0 %v1426
    %1799 = vmatpush.bf16.msra.mxu0 %v1418
    %1800 = vmatpush.bf16.msra.mxu0 %v1410
    %1801 = vmatpush.bf16.msra.mxu0 %v1402
    %1802 = vmatpush.bf16.msra.mxu0 %v1394
    %1803 = vmatpush.bf16.msra.mxu0 %v1386
    %1804 = vmatmul.bf16.gmra.mxu0 %v214
    %v1805 = vpop.f32.mrf.mxu0
    %v1806 = vadd.f32 %v1793, %v1805
    %v1807 = vpop.f32.mrf.mxu0
    %1808 = vdwg.mxu0
    %1809 = vmatpush.bf16.msra.mxu0 %v1506
    %1810 = vmatpush.bf16.msra.mxu0 %v1498
    %1811 = vmatpush.bf16.msra.mxu0 %v1490
    %1812 = vmatpush.bf16.msra.mxu0 %v1482
    %1813 = vmatpush.bf16.msra.mxu0 %v1474
    %1814 = vmatpush.bf16.msra.mxu0 %v1466
    %1815 = vmatpush.bf16.msra.mxu0 %v1458
    %1816 = vmatpush.bf16.msra.mxu0 %v1450
    %1817 = vmatmul.bf16.gmra.mxu0 %v215
    %v1818 = vpop.f32.mrf.mxu0
    %v1819 = vadd.f32 %v1806, %v1818
    %v1820 = vpop.f32.mrf.mxu0
    %1821 = vdwg.mxu0
    %1822 = vmatpush.bf16.msra.mxu0 %v1315
    %1823 = vmatpush.bf16.msra.mxu0 %v1307
    %1824 = vmatpush.bf16.msra.mxu0 %v1299
    %1825 = vmatpush.bf16.msra.mxu0 %v1291
    %1826 = vmatpush.bf16.msra.mxu0 %v1283
    %1827 = vmatpush.bf16.msra.mxu0 %v1275
    %1828 = vmatpush.bf16.msra.mxu0 %v1267
    %1829 = vmatpush.bf16.msra.mxu0 %v1259
    %1830 = vmatmul.bf16.gmra.mxu0 %v212
    %v1831 = vpop.f32.mrf.mxu0
    %v1832 = vadd.f32 %v475, %v1831
    %v1833 = vpop.f32.mrf.mxu0
    %1834 = vdwg.mxu0
    %1835 = vmatpush.bf16.msra.mxu0 %v1379
    %1836 = vmatpush.bf16.msra.mxu0 %v1371
    %1837 = vmatpush.bf16.msra.mxu0 %v1363
    %1838 = vmatpush.bf16.msra.mxu0 %v1355
    %1839 = vmatpush.bf16.msra.mxu0 %v1347
    %1840 = vmatpush.bf16.msra.mxu0 %v1339
    %1841 = vmatpush.bf16.msra.mxu0 %v1331
    %1842 = vmatpush.bf16.msra.mxu0 %v1323
    %1843 = vmatmul.bf16.gmra.mxu0 %v213
    %v1844 = vpop.f32.mrf.mxu0
    %v1845 = vadd.f32 %v1832, %v1844
    %v1846 = vpop.f32.mrf.mxu0
    %1847 = vdwg.mxu0
    %1848 = vmatpush.bf16.msra.mxu0 %v1443
    %1849 = vmatpush.bf16.msra.mxu0 %v1435
    %1850 = vmatpush.bf16.msra.mxu0 %v1427
    %1851 = vmatpush.bf16.msra.mxu0 %v1419
    %1852 = vmatpush.bf16.msra.mxu0 %v1411
    %1853 = vmatpush.bf16.msra.mxu0 %v1403
    %1854 = vmatpush.bf16.msra.mxu0 %v1395
    %1855 = vmatpush.bf16.msra.mxu0 %v1387
    %1856 = vmatmul.bf16.gmra.mxu0 %v214
    %v1857 = vpop.f32.mrf.mxu0
    %v1858 = vadd.f32 %v1845, %v1857
    %v1859 = vpop.f32.mrf.mxu0
    %1860 = vdwg.mxu0
    %1861 = vmatpush.bf16.msra.mxu0 %v1507
    %1862 = vmatpush.bf16.msra.mxu0 %v1499
    %1863 = vmatpush.bf16.msra.mxu0 %v1491
    %1864 = vmatpush.bf16.msra.mxu0 %v1483
    %1865 = vmatpush.bf16.msra.mxu0 %v1475
    %1866 = vmatpush.bf16.msra.mxu0 %v1467
    %1867 = vmatpush.bf16.msra.mxu0 %v1459
    %1868 = vmatpush.bf16.msra.mxu0 %v1451
    %1869 = vmatmul.bf16.gmra.mxu0 %v215
    %v1870 = vpop.f32.mrf.mxu0
    %v1871 = vadd.f32 %v1858, %v1870
    %v1872 = vpop.f32.mrf.mxu0
    %1873 = vdwg.mxu0
    %1874 = vmatpush.bf16.msra.mxu0 %v1316
    %1875 = vmatpush.bf16.msra.mxu0 %v1308
    %1876 = vmatpush.bf16.msra.mxu0 %v1300
    %1877 = vmatpush.bf16.msra.mxu0 %v1292
    %1878 = vmatpush.bf16.msra.mxu0 %v1284
    %1879 = vmatpush.bf16.msra.mxu0 %v1276
    %1880 = vmatpush.bf16.msra.mxu0 %v1268
    %1881 = vmatpush.bf16.msra.mxu0 %v1260
    %1882 = vmatmul.bf16.gmra.mxu0 %v212
    %v1883 = vpop.f32.mrf.mxu0
    %v1884 = vadd.f32 %v476, %v1883
    %v1885 = vpop.f32.mrf.mxu0
    %1886 = vdwg.mxu0
    %1887 = vmatpush.bf16.msra.mxu0 %v1380
    %1888 = vmatpush.bf16.msra.mxu0 %v1372
    %1889 = vmatpush.bf16.msra.mxu0 %v1364
    %1890 = vmatpush.bf16.msra.mxu0 %v1356
    %1891 = vmatpush.bf16.msra.mxu0 %v1348
    %1892 = vmatpush.bf16.msra.mxu0 %v1340
    %1893 = vmatpush.bf16.msra.mxu0 %v1332
    %1894 = vmatpush.bf16.msra.mxu0 %v1324
    %1895 = vmatmul.bf16.gmra.mxu0 %v213
    %v1896 = vpop.f32.mrf.mxu0
    %v1897 = vadd.f32 %v1884, %v1896
    %v1898 = vpop.f32.mrf.mxu0
    %1899 = vdwg.mxu0
    %1900 = vmatpush.bf16.msra.mxu0 %v1444
    %1901 = vmatpush.bf16.msra.mxu0 %v1436
    %1902 = vmatpush.bf16.msra.mxu0 %v1428
    %1903 = vmatpush.bf16.msra.mxu0 %v1420
    %1904 = vmatpush.bf16.msra.mxu0 %v1412
    %1905 = vmatpush.bf16.msra.mxu0 %v1404
    %1906 = vmatpush.bf16.msra.mxu0 %v1396
    %1907 = vmatpush.bf16.msra.mxu0 %v1388
    %1908 = vmatmul.bf16.gmra.mxu0 %v214
    %v1909 = vpop.f32.mrf.mxu0
    %v1910 = vadd.f32 %v1897, %v1909
    %v1911 = vpop.f32.mrf.mxu0
    %1912 = vdwg.mxu0
    %1913 = vmatpush.bf16.msra.mxu0 %v1508
    %1914 = vmatpush.bf16.msra.mxu0 %v1500
    %1915 = vmatpush.bf16.msra.mxu0 %v1492
    %1916 = vmatpush.bf16.msra.mxu0 %v1484
    %1917 = vmatpush.bf16.msra.mxu0 %v1476
    %1918 = vmatpush.bf16.msra.mxu0 %v1468
    %1919 = vmatpush.bf16.msra.mxu0 %v1460
    %1920 = vmatpush.bf16.msra.mxu0 %v1452
    %1921 = vmatmul.bf16.gmra.mxu0 %v215
    %v1922 = vpop.f32.mrf.mxu0
    %v1923 = vadd.f32 %v1910, %v1922
    %v1924 = vpop.f32.mrf.mxu0
    %1925 = vdwg.mxu0
    %1926 = vmatpush.bf16.msra.mxu0 %v1317
    %1927 = vmatpush.bf16.msra.mxu0 %v1309
    %1928 = vmatpush.bf16.msra.mxu0 %v1301
    %1929 = vmatpush.bf16.msra.mxu0 %v1293
    %1930 = vmatpush.bf16.msra.mxu0 %v1285
    %1931 = vmatpush.bf16.msra.mxu0 %v1277
    %1932 = vmatpush.bf16.msra.mxu0 %v1269
    %1933 = vmatpush.bf16.msra.mxu0 %v1261
    %1934 = vmatmul.bf16.gmra.mxu0 %v212
    %v1935 = vpop.f32.mrf.mxu0
    %v1936 = vadd.f32 %v477, %v1935
    %v1937 = vpop.f32.mrf.mxu0
    %1938 = vdwg.mxu0
    %1939 = vmatpush.bf16.msra.mxu0 %v1381
    %1940 = vmatpush.bf16.msra.mxu0 %v1373
    %1941 = vmatpush.bf16.msra.mxu0 %v1365
    %1942 = vmatpush.bf16.msra.mxu0 %v1357
    %1943 = vmatpush.bf16.msra.mxu0 %v1349
    %1944 = vmatpush.bf16.msra.mxu0 %v1341
    %1945 = vmatpush.bf16.msra.mxu0 %v1333
    %1946 = vmatpush.bf16.msra.mxu0 %v1325
    %1947 = vmatmul.bf16.gmra.mxu0 %v213
    %v1948 = vpop.f32.mrf.mxu0
    %v1949 = vadd.f32 %v1936, %v1948
    %v1950 = vpop.f32.mrf.mxu0
    %1951 = vdwg.mxu0
    %1952 = vmatpush.bf16.msra.mxu0 %v1445
    %1953 = vmatpush.bf16.msra.mxu0 %v1437
    %1954 = vmatpush.bf16.msra.mxu0 %v1429
    %1955 = vmatpush.bf16.msra.mxu0 %v1421
    %1956 = vmatpush.bf16.msra.mxu0 %v1413
    %1957 = vmatpush.bf16.msra.mxu0 %v1405
    %1958 = vmatpush.bf16.msra.mxu0 %v1397
    %1959 = vmatpush.bf16.msra.mxu0 %v1389
    %1960 = vmatmul.bf16.gmra.mxu0 %v214
    %v1961 = vpop.f32.mrf.mxu0
    %v1962 = vadd.f32 %v1949, %v1961
    %v1963 = vpop.f32.mrf.mxu0
    %1964 = vdwg.mxu0
    %1965 = vmatpush.bf16.msra.mxu0 %v1509
    %1966 = vmatpush.bf16.msra.mxu0 %v1501
    %1967 = vmatpush.bf16.msra.mxu0 %v1493
    %1968 = vmatpush.bf16.msra.mxu0 %v1485
    %1969 = vmatpush.bf16.msra.mxu0 %v1477
    %1970 = vmatpush.bf16.msra.mxu0 %v1469
    %1971 = vmatpush.bf16.msra.mxu0 %v1461
    %1972 = vmatpush.bf16.msra.mxu0 %v1453
    %1973 = vmatmul.bf16.gmra.mxu0 %v215
    %v1974 = vpop.f32.mrf.mxu0
    %v1975 = vadd.f32 %v1962, %v1974
    %v1976 = vpop.f32.mrf.mxu0
    %1977 = vdwg.mxu0
    %1978 = vmatpush.bf16.msra.mxu0 %v1318
    %1979 = vmatpush.bf16.msra.mxu0 %v1310
    %1980 = vmatpush.bf16.msra.mxu0 %v1302
    %1981 = vmatpush.bf16.msra.mxu0 %v1294
    %1982 = vmatpush.bf16.msra.mxu0 %v1286
    %1983 = vmatpush.bf16.msra.mxu0 %v1278
    %1984 = vmatpush.bf16.msra.mxu0 %v1270
    %1985 = vmatpush.bf16.msra.mxu0 %v1262
    %1986 = vmatmul.bf16.gmra.mxu0 %v212
    %v1987 = vpop.f32.mrf.mxu0
    %v1988 = vadd.f32 %v478, %v1987
    %v1989 = vpop.f32.mrf.mxu0
    %1990 = vdwg.mxu0
    %1991 = vmatpush.bf16.msra.mxu0 %v1382
    %1992 = vmatpush.bf16.msra.mxu0 %v1374
    %1993 = vmatpush.bf16.msra.mxu0 %v1366
    %1994 = vmatpush.bf16.msra.mxu0 %v1358
    %1995 = vmatpush.bf16.msra.mxu0 %v1350
    %1996 = vmatpush.bf16.msra.mxu0 %v1342
    %1997 = vmatpush.bf16.msra.mxu0 %v1334
    %1998 = vmatpush.bf16.msra.mxu0 %v1326
    %1999 = vmatmul.bf16.gmra.mxu0 %v213
    %v2000 = vpop.f32.mrf.mxu0
    %v2001 = vadd.f32 %v1988, %v2000
    %v2002 = vpop.f32.mrf.mxu0
    %2003 = vdwg.mxu0
    %2004 = vmatpush.bf16.msra.mxu0 %v1446
    %2005 = vmatpush.bf16.msra.mxu0 %v1438
    %2006 = vmatpush.bf16.msra.mxu0 %v1430
    %2007 = vmatpush.bf16.msra.mxu0 %v1422
    %2008 = vmatpush.bf16.msra.mxu0 %v1414
    %2009 = vmatpush.bf16.msra.mxu0 %v1406
    %2010 = vmatpush.bf16.msra.mxu0 %v1398
    %2011 = vmatpush.bf16.msra.mxu0 %v1390
    %2012 = vmatmul.bf16.gmra.mxu0 %v214
    %v2013 = vpop.f32.mrf.mxu0
    %v2014 = vadd.f32 %v2001, %v2013
    %v2015 = vpop.f32.mrf.mxu0
    %2016 = vdwg.mxu0
    %2017 = vmatpush.bf16.msra.mxu0 %v1510
    %2018 = vmatpush.bf16.msra.mxu0 %v1502
    %2019 = vmatpush.bf16.msra.mxu0 %v1494
    %2020 = vmatpush.bf16.msra.mxu0 %v1486
    %2021 = vmatpush.bf16.msra.mxu0 %v1478
    %2022 = vmatpush.bf16.msra.mxu0 %v1470
    %2023 = vmatpush.bf16.msra.mxu0 %v1462
    %2024 = vmatpush.bf16.msra.mxu0 %v1454
    %2025 = vmatmul.bf16.gmra.mxu0 %v215
    %v2026 = vpop.f32.mrf.mxu0
    %v2027 = vadd.f32 %v2014, %v2026
    %v2028 = vpop.f32.mrf.mxu0
    %2029 = vdwg.mxu0
    %2030 = vmatpush.bf16.msra.mxu0 %v1319
    %2031 = vmatpush.bf16.msra.mxu0 %v1311
    %2032 = vmatpush.bf16.msra.mxu0 %v1303
    %2033 = vmatpush.bf16.msra.mxu0 %v1295
    %2034 = vmatpush.bf16.msra.mxu0 %v1287
    %2035 = vmatpush.bf16.msra.mxu0 %v1279
    %2036 = vmatpush.bf16.msra.mxu0 %v1271
    %2037 = vmatpush.bf16.msra.mxu0 %v1263
    %2038 = vmatmul.bf16.gmra.mxu0 %v212
    %v2039 = vpop.f32.mrf.mxu0
    %v2040 = vadd.f32 %v479, %v2039
    %v2041 = vpop.f32.mrf.mxu0
    %2042 = vdwg.mxu0
    %2043 = vmatpush.bf16.msra.mxu0 %v1383
    %2044 = vmatpush.bf16.msra.mxu0 %v1375
    %2045 = vmatpush.bf16.msra.mxu0 %v1367
    %2046 = vmatpush.bf16.msra.mxu0 %v1359
    %2047 = vmatpush.bf16.msra.mxu0 %v1351
    %2048 = vmatpush.bf16.msra.mxu0 %v1343
    %2049 = vmatpush.bf16.msra.mxu0 %v1335
    %2050 = vmatpush.bf16.msra.mxu0 %v1327
    %2051 = vmatmul.bf16.gmra.mxu0 %v213
    %v2052 = vpop.f32.mrf.mxu0
    %v2053 = vadd.f32 %v2040, %v2052
    %v2054 = vpop.f32.mrf.mxu0
    %2055 = vdwg.mxu0
    %2056 = vmatpush.bf16.msra.mxu0 %v1447
    %2057 = vmatpush.bf16.msra.mxu0 %v1439
    %2058 = vmatpush.bf16.msra.mxu0 %v1431
    %2059 = vmatpush.bf16.msra.mxu0 %v1423
    %2060 = vmatpush.bf16.msra.mxu0 %v1415
    %2061 = vmatpush.bf16.msra.mxu0 %v1407
    %2062 = vmatpush.bf16.msra.mxu0 %v1399
    %2063 = vmatpush.bf16.msra.mxu0 %v1391
    %2064 = vmatmul.bf16.gmra.mxu0 %v214
    %v2065 = vpop.f32.mrf.mxu0
    %v2066 = vadd.f32 %v2053, %v2065
    %v2067 = vpop.f32.mrf.mxu0
    %2068 = vdwg.mxu0
    %2069 = vmatpush.bf16.msra.mxu0 %v1511
    %2070 = vmatpush.bf16.msra.mxu0 %v1503
    %2071 = vmatpush.bf16.msra.mxu0 %v1495
    %2072 = vmatpush.bf16.msra.mxu0 %v1487
    %2073 = vmatpush.bf16.msra.mxu0 %v1479
    %2074 = vmatpush.bf16.msra.mxu0 %v1471
    %2075 = vmatpush.bf16.msra.mxu0 %v1463
    %2076 = vmatpush.bf16.msra.mxu0 %v1455
    %2077 = vmatmul.bf16.gmra.mxu0 %v215
    %v2078 = vpop.f32.mrf.mxu0
    %v2079 = vadd.f32 %v2066, %v2078
    %v2080 = vpop.f32.mrf.mxu0
    %2081 = vdwg.mxu0
    %2082 = vmatpush.bf16.msra.mxu0 %v1320
    %2083 = vmatpush.bf16.msra.mxu0 %v1312
    %2084 = vmatpush.bf16.msra.mxu0 %v1304
    %2085 = vmatpush.bf16.msra.mxu0 %v1296
    %2086 = vmatpush.bf16.msra.mxu0 %v1288
    %2087 = vmatpush.bf16.msra.mxu0 %v1280
    %2088 = vmatpush.bf16.msra.mxu0 %v1272
    %2089 = vmatpush.bf16.msra.mxu0 %v1264
    %2090 = vmatmul.bf16.gmra.mxu0 %v212
    %v2091 = vpop.f32.mrf.mxu0
    %v2092 = vadd.f32 %v480, %v2091
    %v2093 = vpop.f32.mrf.mxu0
    %2094 = vdwg.mxu0
    %2095 = vmatpush.bf16.msra.mxu0 %v1384
    %2096 = vmatpush.bf16.msra.mxu0 %v1376
    %2097 = vmatpush.bf16.msra.mxu0 %v1368
    %2098 = vmatpush.bf16.msra.mxu0 %v1360
    %2099 = vmatpush.bf16.msra.mxu0 %v1352
    %2100 = vmatpush.bf16.msra.mxu0 %v1344
    %2101 = vmatpush.bf16.msra.mxu0 %v1336
    %2102 = vmatpush.bf16.msra.mxu0 %v1328
    %2103 = vmatmul.bf16.gmra.mxu0 %v213
    %v2104 = vpop.f32.mrf.mxu0
    %v2105 = vadd.f32 %v2092, %v2104
    %v2106 = vpop.f32.mrf.mxu0
    %2107 = vdwg.mxu0
    %2108 = vmatpush.bf16.msra.mxu0 %v1448
    %2109 = vmatpush.bf16.msra.mxu0 %v1440
    %2110 = vmatpush.bf16.msra.mxu0 %v1432
    %2111 = vmatpush.bf16.msra.mxu0 %v1424
    %2112 = vmatpush.bf16.msra.mxu0 %v1416
    %2113 = vmatpush.bf16.msra.mxu0 %v1408
    %2114 = vmatpush.bf16.msra.mxu0 %v1400
    %2115 = vmatpush.bf16.msra.mxu0 %v1392
    %2116 = vmatmul.bf16.gmra.mxu0 %v214
    %v2117 = vpop.f32.mrf.mxu0
    %v2118 = vadd.f32 %v2105, %v2117
    %v2119 = vpop.f32.mrf.mxu0
    %2120 = vdwg.mxu0
    %2121 = vmatpush.bf16.msra.mxu0 %v1512
    %2122 = vmatpush.bf16.msra.mxu0 %v1504
    %2123 = vmatpush.bf16.msra.mxu0 %v1496
    %2124 = vmatpush.bf16.msra.mxu0 %v1488
    %2125 = vmatpush.bf16.msra.mxu0 %v1480
    %2126 = vmatpush.bf16.msra.mxu0 %v1472
    %2127 = vmatpush.bf16.msra.mxu0 %v1464
    %2128 = vmatpush.bf16.msra.mxu0 %v1456
    %2129 = vmatmul.bf16.gmra.mxu0 %v215
    %v2130 = vpop.f32.mrf.mxu0
    %v2131 = vadd.f32 %v2118, %v2130
    %v2132 = vpop.f32.mrf.mxu0
    %2133 = vdwg.mxu0
    %2134 = vmatpush.bf16.msra.mxu0 %v1321
    %2135 = vmatpush.bf16.msra.mxu0 %v1313
    %2136 = vmatpush.bf16.msra.mxu0 %v1305
    %2137 = vmatpush.bf16.msra.mxu0 %v1297
    %2138 = vmatpush.bf16.msra.mxu0 %v1289
    %2139 = vmatpush.bf16.msra.mxu0 %v1281
    %2140 = vmatpush.bf16.msra.mxu0 %v1273
    %2141 = vmatpush.bf16.msra.mxu0 %v1265
    %2142 = vmatmul.bf16.gmra.mxu0 %v212
    %v2143 = vpop.f32.mrf.mxu0
    %v2144 = vadd.f32 %v481, %v2143
    %v2145 = vpop.f32.mrf.mxu0
    %2146 = vdwg.mxu0
    %2147 = vmatpush.bf16.msra.mxu0 %v1385
    %2148 = vmatpush.bf16.msra.mxu0 %v1377
    %2149 = vmatpush.bf16.msra.mxu0 %v1369
    %2150 = vmatpush.bf16.msra.mxu0 %v1361
    %2151 = vmatpush.bf16.msra.mxu0 %v1353
    %2152 = vmatpush.bf16.msra.mxu0 %v1345
    %2153 = vmatpush.bf16.msra.mxu0 %v1337
    %2154 = vmatpush.bf16.msra.mxu0 %v1329
    %2155 = vmatmul.bf16.gmra.mxu0 %v213
    %v2156 = vpop.f32.mrf.mxu0
    %v2157 = vadd.f32 %v2144, %v2156
    %v2158 = vpop.f32.mrf.mxu0
    %2159 = vdwg.mxu0
    %2160 = vmatpush.bf16.msra.mxu0 %v1449
    %2161 = vmatpush.bf16.msra.mxu0 %v1441
    %2162 = vmatpush.bf16.msra.mxu0 %v1433
    %2163 = vmatpush.bf16.msra.mxu0 %v1425
    %2164 = vmatpush.bf16.msra.mxu0 %v1417
    %2165 = vmatpush.bf16.msra.mxu0 %v1409
    %2166 = vmatpush.bf16.msra.mxu0 %v1401
    %2167 = vmatpush.bf16.msra.mxu0 %v1393
    %2168 = vmatmul.bf16.gmra.mxu0 %v214
    %v2169 = vpop.f32.mrf.mxu0
    %v2170 = vadd.f32 %v2157, %v2169
    %v2171 = vpop.f32.mrf.mxu0
    %2172 = vdwg.mxu0
    %2173 = vmatpush.bf16.msra.mxu0 %v1513
    %2174 = vmatpush.bf16.msra.mxu0 %v1505
    %2175 = vmatpush.bf16.msra.mxu0 %v1497
    %2176 = vmatpush.bf16.msra.mxu0 %v1489
    %2177 = vmatpush.bf16.msra.mxu0 %v1481
    %2178 = vmatpush.bf16.msra.mxu0 %v1473
    %2179 = vmatpush.bf16.msra.mxu0 %v1465
    %2180 = vmatpush.bf16.msra.mxu0 %v1457
    %2181 = vmatmul.bf16.gmra.mxu0 %v215
    %v2182 = vpop.f32.mrf.mxu0
    %v2183 = vadd.f32 %v2170, %v2182
    %v2184 = vpop.f32.mrf.mxu0
    %2185 = vdwg.mxu0
    %v2186 = vmax.f32 %v1819, 0.0
    %v2187 = vmax.f32 %v1871, 0.0
    %v2188 = vmax.f32 %v1923, 0.0
    %v2189 = vmax.f32 %v1975, 0.0
    %v2190 = vmax.f32 %v2027, 0.0
    %v2191 = vmax.f32 %v2079, 0.0
    %v2192 = vmax.f32 %v2131, 0.0
    %v2193 = vmax.f32 %v2183, 0.0
    %v2194 = vpack.c.bf16 %v2186, %v2186
    %v2195 = vpack.c.bf16 %v2187, %v2187
    %v2196 = vpack.c.bf16 %v2188, %v2188
    %v2197 = vpack.c.bf16 %v2189, %v2189
    %v2198 = vpack.c.bf16 %v2190, %v2190
    %v2199 = vpack.c.bf16 %v2191, %v2191
    %v2200 = vpack.c.bf16 %v2192, %v2192
    %v2201 = vpack.c.bf16 %v2193, %v2193
    %v2202 = vld [vmem:[#allocation11] sm:$0xf]
    %v2203 = vld [vmem:[#allocation11 + $0x4] sm:$0xf]
    %v2204 = vld [vmem:[#allocation11 + $0x8] sm:$0xf]
    %v2205 = vld [vmem:[#allocation11 + $0xc] sm:$0xf]
    %v2206 = vld [vmem:[#allocation11 + $0x10] sm:$0xf]
    %v2207 = vld [vmem:[#allocation11 + $0x14] sm:$0xf]
    %v2208 = vld [vmem:[#allocation11 + $0x18] sm:$0xf]
    %v2209 = vld [vmem:[#allocation11 + $0x1c] sm:$0xf]
    %v2210 = vld [vmem:[#allocation11 + $0x20] sm:$0xf]
    %v2211 = vld [vmem:[#allocation11 + $0x24] sm:$0xf]
    %v2212 = vld [vmem:[#allocation11 + $0x28] sm:$0xf]
    %v2213 = vld [vmem:[#allocation11 + $0x2c] sm:$0xf]
    %v2214 = vld [vmem:[#allocation11 + $0x30] sm:$0xf]
    %v2215 = vld [vmem:[#allocation11 + $0x34] sm:$0xf]
    %v2216 = vld [vmem:[#allocation11 + $0x38] sm:$0xf]
    %v2217 = vld [vmem:[#allocation11 + $0x3c] sm:$0xf]
    %v2218 = vld [vmem:[#allocation11 + $0x40] sm:$0xf]
    %v2219 = vld [vmem:[#allocation11 + $0x44] sm:$0xf]
    %v2220 = vld [vmem:[#allocation11 + $0x48] sm:$0xf]
    %v2221 = vld [vmem:[#allocation11 + $0x4c] sm:$0xf]
    %v2222 = vld [vmem:[#allocation11 + $0x50] sm:$0xf]
    %v2223 = vld [vmem:[#allocation11 + $0x54] sm:$0xf]
    %v2224 = vld [vmem:[#allocation11 + $0x58] sm:$0xf]
    %v2225 = vld [vmem:[#allocation11 + $0x5c] sm:$0xf]
    %v2226 = vld [vmem:[#allocation11 + $0x60] sm:$0xf]
    %v2227 = vld [vmem:[#allocation11 + $0x64] sm:$0xf]
    %v2228 = vld [vmem:[#allocation11 + $0x68] sm:$0xf]
    %v2229 = vld [vmem:[#allocation11 + $0x6c] sm:$0xf]
    %v2230 = vld [vmem:[#allocation11 + $0x70] sm:$0xf]
    %v2231 = vld [vmem:[#allocation11 + $0x74] sm:$0xf]
    %v2232 = vld [vmem:[#allocation11 + $0x78] sm:$0xf]
    %v2233 = vld [vmem:[#allocation11 + $0x7c] sm:$0xf]
    %v2234 = vld [vmem:[#allocation11 + $0x80] sm:$0xf]
    %v2235 = vld [vmem:[#allocation11 + $0x84] sm:$0xf]
    %v2236 = vld [vmem:[#allocation11 + $0x88] sm:$0xf]
    %v2237 = vld [vmem:[#allocation11 + $0x8c] sm:$0xf]
    %v2238 = vld [vmem:[#allocation11 + $0x90] sm:$0xf]
    %v2239 = vld [vmem:[#allocation11 + $0x94] sm:$0xf]
    %v2240 = vld [vmem:[#allocation11 + $0x98] sm:$0xf]
    %v2241 = vld [vmem:[#allocation11 + $0x9c] sm:$0xf]
    %v2242 = vld [vmem:[#allocation11 + $0xa0] sm:$0xf]
    %v2243 = vld [vmem:[#allocation11 + $0xa4] sm:$0xf]
    %v2244 = vld [vmem:[#allocation11 + $0xa8] sm:$0xf]
    %v2245 = vld [vmem:[#allocation11 + $0xac] sm:$0xf]
    %v2246 = vld [vmem:[#allocation11 + $0xb0] sm:$0xf]
    %v2247 = vld [vmem:[#allocation11 + $0xb4] sm:$0xf]
    %v2248 = vld [vmem:[#allocation11 + $0xb8] sm:$0xf]
    %v2249 = vld [vmem:[#allocation11 + $0xbc] sm:$0xf]
    %v2250 = vld [vmem:[#allocation11 + $0xc0] sm:$0xf]
    %v2251 = vld [vmem:[#allocation11 + $0xc4] sm:$0xf]
    %v2252 = vld [vmem:[#allocation11 + $0xc8] sm:$0xf]
    %v2253 = vld [vmem:[#allocation11 + $0xcc] sm:$0xf]
    %v2254 = vld [vmem:[#allocation11 + $0xd0] sm:$0xf]
    %v2255 = vld [vmem:[#allocation11 + $0xd4] sm:$0xf]
    %v2256 = vld [vmem:[#allocation11 + $0xd8] sm:$0xf]
    %v2257 = vld [vmem:[#allocation11 + $0xdc] sm:$0xf]
    %v2258 = vld [vmem:[#allocation11 + $0xe0] sm:$0xf]
    %v2259 = vld [vmem:[#allocation11 + $0xe4] sm:$0xf]
    %v2260 = vld [vmem:[#allocation11 + $0xe8] sm:$0xf]
    %v2261 = vld [vmem:[#allocation11 + $0xec] sm:$0xf]
    %v2262 = vld [vmem:[#allocation11 + $0xf0] sm:$0xf]
    %v2263 = vld [vmem:[#allocation11 + $0xf4] sm:$0xf]
    %v2264 = vld [vmem:[#allocation11 + $0xf8] sm:$0xf]
    %v2265 = vld [vmem:[#allocation11 + $0xfc] sm:$0xf]
    %v2266 = vld [vmem:[#allocation11 + $0x100] sm:$0xf]
    %v2267 = vld [vmem:[#allocation11 + $0x104] sm:$0xf]
    %v2268 = vld [vmem:[#allocation11 + $0x108] sm:$0xf]
    %v2269 = vld [vmem:[#allocation11 + $0x10c] sm:$0xf]
    %v2270 = vld [vmem:[#allocation11 + $0x110] sm:$0xf]
    %v2271 = vld [vmem:[#allocation11 + $0x114] sm:$0xf]
    %v2272 = vld [vmem:[#allocation11 + $0x118] sm:$0xf]
    %v2273 = vld [vmem:[#allocation11 + $0x11c] sm:$0xf]
    %v2274 = vld [vmem:[#allocation11 + $0x120] sm:$0xf]
    %v2275 = vld [vmem:[#allocation11 + $0x124] sm:$0xf]
    %v2276 = vld [vmem:[#allocation11 + $0x128] sm:$0xf]
    %v2277 = vld [vmem:[#allocation11 + $0x12c] sm:$0xf]
    %v2278 = vld [vmem:[#allocation11 + $0x130] sm:$0xf]
    %v2279 = vld [vmem:[#allocation11 + $0x134] sm:$0xf]
    %v2280 = vld [vmem:[#allocation11 + $0x138] sm:$0xf]
    %v2281 = vld [vmem:[#allocation11 + $0x13c] sm:$0xf]
    %v2282 = vld [vmem:[#allocation11 + $0x140] sm:$0xf]
    %v2283 = vld [vmem:[#allocation11 + $0x144] sm:$0xf]
    %v2284 = vld [vmem:[#allocation11 + $0x148] sm:$0xf]
    %v2285 = vld [vmem:[#allocation11 + $0x14c] sm:$0xf]
    %v2286 = vld [vmem:[#allocation11 + $0x150] sm:$0xf]
    %v2287 = vld [vmem:[#allocation11 + $0x154] sm:$0xf]
    %v2288 = vld [vmem:[#allocation11 + $0x158] sm:$0xf]
    %v2289 = vld [vmem:[#allocation11 + $0x15c] sm:$0xf]
    %v2290 = vld [vmem:[#allocation11 + $0x160] sm:$0xf]
    %v2291 = vld [vmem:[#allocation11 + $0x164] sm:$0xf]
    %v2292 = vld [vmem:[#allocation11 + $0x168] sm:$0xf]
    %v2293 = vld [vmem:[#allocation11 + $0x16c] sm:$0xf]
    %v2294 = vld [vmem:[#allocation11 + $0x170] sm:$0xf]
    %v2295 = vld [vmem:[#allocation11 + $0x174] sm:$0xf]
    %v2296 = vld [vmem:[#allocation11 + $0x178] sm:$0xf]
    %v2297 = vld [vmem:[#allocation11 + $0x17c] sm:$0xf]
    %v2298 = vld [vmem:[#allocation11 + $0x180] sm:$0xf]
    %v2299 = vld [vmem:[#allocation11 + $0x184] sm:$0xf]
    %v2300 = vld [vmem:[#allocation11 + $0x188] sm:$0xf]
    %v2301 = vld [vmem:[#allocation11 + $0x18c] sm:$0xf]
    %v2302 = vld [vmem:[#allocation11 + $0x190] sm:$0xf]
    %v2303 = vld [vmem:[#allocation11 + $0x194] sm:$0xf]
    %v2304 = vld [vmem:[#allocation11 + $0x198] sm:$0xf]
    %v2305 = vld [vmem:[#allocation11 + $0x19c] sm:$0xf]
    %v2306 = vld [vmem:[#allocation11 + $0x1a0] sm:$0xf]
    %v2307 = vld [vmem:[#allocation11 + $0x1a4] sm:$0xf]
    %v2308 = vld [vmem:[#allocation11 + $0x1a8] sm:$0xf]
    %v2309 = vld [vmem:[#allocation11 + $0x1ac] sm:$0xf]
    %v2310 = vld [vmem:[#allocation11 + $0x1b0] sm:$0xf]
    %v2311 = vld [vmem:[#allocation11 + $0x1b4] sm:$0xf]
    %v2312 = vld [vmem:[#allocation11 + $0x1b8] sm:$0xf]
    %v2313 = vld [vmem:[#allocation11 + $0x1bc] sm:$0xf]
    %v2314 = vld [vmem:[#allocation11 + $0x1c0] sm:$0xf]
    %v2315 = vld [vmem:[#allocation11 + $0x1c4] sm:$0xf]
    %v2316 = vld [vmem:[#allocation11 + $0x1c8] sm:$0xf]
    %v2317 = vld [vmem:[#allocation11 + $0x1cc] sm:$0xf]
    %v2318 = vld [vmem:[#allocation11 + $0x1d0] sm:$0xf]
    %v2319 = vld [vmem:[#allocation11 + $0x1d4] sm:$0xf]
    %v2320 = vld [vmem:[#allocation11 + $0x1d8] sm:$0xf]
    %v2321 = vld [vmem:[#allocation11 + $0x1dc] sm:$0xf]
    %v2322 = vld [vmem:[#allocation11 + $0x1e0] sm:$0xf]
    %v2323 = vld [vmem:[#allocation11 + $0x1e4] sm:$0xf]
    %v2324 = vld [vmem:[#allocation11 + $0x1e8] sm:$0xf]
    %v2325 = vld [vmem:[#allocation11 + $0x1ec] sm:$0xf]
    %v2326 = vld [vmem:[#allocation11 + $0x1f0] sm:$0xf]
    %v2327 = vld [vmem:[#allocation11 + $0x1f4] sm:$0xf]
    %v2328 = vld [vmem:[#allocation11 + $0x1f8] sm:$0xf]
    %v2329 = vld [vmem:[#allocation11 + $0x1fc] sm:$0xf]
    %v2330 = vld [vmem:[%s6] sm:$0x1]
    %v2332 = vperm.slane %v2330, 0
    %v2462 = vunpack.c.l.b16 %v2202
    %v2463 = vunpack.c.l.b16 %v2203
    %v2464 = vunpack.c.l.b16 %v2204
    %v2465 = vunpack.c.l.b16 %v2205
    %v2466 = vunpack.c.l.b16 %v2206
    %v2467 = vunpack.c.l.b16 %v2207
    %v2468 = vunpack.c.l.b16 %v2208
    %v2469 = vunpack.c.l.b16 %v2209
    %v2470 = vunpack.c.l.b16 %v2210
    %v2471 = vunpack.c.l.b16 %v2211
    %v2472 = vunpack.c.l.b16 %v2212
    %v2473 = vunpack.c.l.b16 %v2213
    %v2474 = vunpack.c.l.b16 %v2214
    %v2475 = vunpack.c.l.b16 %v2215
    %v2476 = vunpack.c.l.b16 %v2216
    %v2477 = vunpack.c.l.b16 %v2217
    %v2478 = vunpack.c.l.b16 %v2218
    %v2479 = vunpack.c.l.b16 %v2219
    %v2480 = vunpack.c.l.b16 %v2220
    %v2481 = vunpack.c.l.b16 %v2221
    %v2482 = vunpack.c.l.b16 %v2222
    %v2483 = vunpack.c.l.b16 %v2223
    %v2484 = vunpack.c.l.b16 %v2224
    %v2485 = vunpack.c.l.b16 %v2225
    %v2486 = vunpack.c.l.b16 %v2226
    %v2487 = vunpack.c.l.b16 %v2227
    %v2488 = vunpack.c.l.b16 %v2228
    %v2489 = vunpack.c.l.b16 %v2229
    %v2490 = vunpack.c.l.b16 %v2230
    %v2491 = vunpack.c.l.b16 %v2231
    %v2492 = vunpack.c.l.b16 %v2232
    %v2493 = vunpack.c.l.b16 %v2233
    %v2494 = vunpack.c.l.b16 %v2234
    %v2495 = vunpack.c.l.b16 %v2235
    %v2496 = vunpack.c.l.b16 %v2236
    %v2497 = vunpack.c.l.b16 %v2237
    %v2498 = vunpack.c.l.b16 %v2238
    %v2499 = vunpack.c.l.b16 %v2239
    %v2500 = vunpack.c.l.b16 %v2240
    %v2501 = vunpack.c.l.b16 %v2241
    %v2502 = vunpack.c.l.b16 %v2242
    %v2503 = vunpack.c.l.b16 %v2243
    %v2504 = vunpack.c.l.b16 %v2244
    %v2505 = vunpack.c.l.b16 %v2245
    %v2506 = vunpack.c.l.b16 %v2246
    %v2507 = vunpack.c.l.b16 %v2247
    %v2508 = vunpack.c.l.b16 %v2248
    %v2509 = vunpack.c.l.b16 %v2249
    %v2510 = vunpack.c.l.b16 %v2250
    %v2511 = vunpack.c.l.b16 %v2251
    %v2512 = vunpack.c.l.b16 %v2252
    %v2513 = vunpack.c.l.b16 %v2253
    %v2514 = vunpack.c.l.b16 %v2254
    %v2515 = vunpack.c.l.b16 %v2255
    %v2516 = vunpack.c.l.b16 %v2256
    %v2517 = vunpack.c.l.b16 %v2257
    %v2518 = vunpack.c.l.b16 %v2258
    %v2519 = vunpack.c.l.b16 %v2259
    %v2520 = vunpack.c.l.b16 %v2260
    %v2521 = vunpack.c.l.b16 %v2261
    %v2522 = vunpack.c.l.b16 %v2262
    %v2523 = vunpack.c.l.b16 %v2263
    %v2524 = vunpack.c.l.b16 %v2264
    %v2525 = vunpack.c.l.b16 %v2265
    %v2526 = vunpack.c.l.b16 %v2266
    %v2527 = vunpack.c.l.b16 %v2267
    %v2528 = vunpack.c.l.b16 %v2268
    %v2529 = vunpack.c.l.b16 %v2269
    %v2530 = vunpack.c.l.b16 %v2270
    %v2531 = vunpack.c.l.b16 %v2271
    %v2532 = vunpack.c.l.b16 %v2272
    %v2533 = vunpack.c.l.b16 %v2273
    %v2534 = vunpack.c.l.b16 %v2274
    %v2535 = vunpack.c.l.b16 %v2275
    %v2536 = vunpack.c.l.b16 %v2276
    %v2537 = vunpack.c.l.b16 %v2277
    %v2538 = vunpack.c.l.b16 %v2278
    %v2539 = vunpack.c.l.b16 %v2279
    %v2540 = vunpack.c.l.b16 %v2280
    %v2541 = vunpack.c.l.b16 %v2281
    %v2542 = vunpack.c.l.b16 %v2282
    %v2543 = vunpack.c.l.b16 %v2283
    %v2544 = vunpack.c.l.b16 %v2284
    %v2545 = vunpack.c.l.b16 %v2285
    %v2546 = vunpack.c.l.b16 %v2286
    %v2547 = vunpack.c.l.b16 %v2287
    %v2548 = vunpack.c.l.b16 %v2288
    %v2549 = vunpack.c.l.b16 %v2289
    %v2550 = vunpack.c.l.b16 %v2290
    %v2551 = vunpack.c.l.b16 %v2291
    %v2552 = vunpack.c.l.b16 %v2292
    %v2553 = vunpack.c.l.b16 %v2293
    %v2554 = vunpack.c.l.b16 %v2294
    %v2555 = vunpack.c.l.b16 %v2295
    %v2556 = vunpack.c.l.b16 %v2296
    %v2557 = vunpack.c.l.b16 %v2297
    %v2558 = vunpack.c.l.b16 %v2298
    %v2559 = vunpack.c.l.b16 %v2299
    %v2560 = vunpack.c.l.b16 %v2300
    %v2561 = vunpack.c.l.b16 %v2301
    %v2562 = vunpack.c.l.b16 %v2302
    %v2563 = vunpack.c.l.b16 %v2303
    %v2564 = vunpack.c.l.b16 %v2304
    %v2565 = vunpack.c.l.b16 %v2305
    %v2566 = vunpack.c.l.b16 %v2306
    %v2567 = vunpack.c.l.b16 %v2307
    %v2568 = vunpack.c.l.b16 %v2308
    %v2569 = vunpack.c.l.b16 %v2309
    %v2570 = vunpack.c.l.b16 %v2310
    %v2571 = vunpack.c.l.b16 %v2311
    %v2572 = vunpack.c.l.b16 %v2312
    %v2573 = vunpack.c.l.b16 %v2313
    %v2574 = vunpack.c.l.b16 %v2314
    %v2575 = vunpack.c.l.b16 %v2315
    %v2576 = vunpack.c.l.b16 %v2316
    %v2577 = vunpack.c.l.b16 %v2317
    %v2578 = vunpack.c.l.b16 %v2318
    %v2579 = vunpack.c.l.b16 %v2319
    %v2580 = vunpack.c.l.b16 %v2320
    %v2581 = vunpack.c.l.b16 %v2321
    %v2582 = vunpack.c.l.b16 %v2322
    %v2583 = vunpack.c.l.b16 %v2323
    %v2584 = vunpack.c.l.b16 %v2324
    %v2585 = vunpack.c.l.b16 %v2325
    %v2586 = vunpack.c.l.b16 %v2326
    %v2587 = vunpack.c.l.b16 %v2327
    %v2588 = vunpack.c.l.b16 %v2328
    %v2589 = vunpack.c.l.b16 %v2329
    %v2590 = vpack.c.b16 %v2463, %v2462
    %v2591 = vpack.c.b16 %v2465, %v2464
    %v2592 = vpack.c.b16 %v2467, %v2466
    %v2593 = vpack.c.b16 %v2469, %v2468
    %v2594 = vpack.c.b16 %v2471, %v2470
    %v2595 = vpack.c.b16 %v2473, %v2472
    %v2596 = vpack.c.b16 %v2475, %v2474
    %v2597 = vpack.c.b16 %v2477, %v2476
    %v2598 = vpack.c.b16 %v2479, %v2478
    %v2599 = vpack.c.b16 %v2481, %v2480
    %v2600 = vpack.c.b16 %v2483, %v2482
    %v2601 = vpack.c.b16 %v2485, %v2484
    %v2602 = vpack.c.b16 %v2487, %v2486
    %v2603 = vpack.c.b16 %v2489, %v2488
    %v2604 = vpack.c.b16 %v2491, %v2490
    %v2605 = vpack.c.b16 %v2493, %v2492
    %v2606 = vpack.c.b16 %v2495, %v2494
    %v2607 = vpack.c.b16 %v2497, %v2496
    %v2608 = vpack.c.b16 %v2499, %v2498
    %v2609 = vpack.c.b16 %v2501, %v2500
    %v2610 = vpack.c.b16 %v2503, %v2502
    %v2611 = vpack.c.b16 %v2505, %v2504
    %v2612 = vpack.c.b16 %v2507, %v2506
    %v2613 = vpack.c.b16 %v2509, %v2508
    %v2614 = vpack.c.b16 %v2511, %v2510
    %v2615 = vpack.c.b16 %v2513, %v2512
    %v2616 = vpack.c.b16 %v2515, %v2514
    %v2617 = vpack.c.b16 %v2517, %v2516
    %v2618 = vpack.c.b16 %v2519, %v2518
    %v2619 = vpack.c.b16 %v2521, %v2520
    %v2620 = vpack.c.b16 %v2523, %v2522
    %v2621 = vpack.c.b16 %v2525, %v2524
    %v2622 = vpack.c.b16 %v2527, %v2526
    %v2623 = vpack.c.b16 %v2529, %v2528
    %v2624 = vpack.c.b16 %v2531, %v2530
    %v2625 = vpack.c.b16 %v2533, %v2532
    %v2626 = vpack.c.b16 %v2535, %v2534
    %v2627 = vpack.c.b16 %v2537, %v2536
    %v2628 = vpack.c.b16 %v2539, %v2538
    %v2629 = vpack.c.b16 %v2541, %v2540
    %v2630 = vpack.c.b16 %v2543, %v2542
    %v2631 = vpack.c.b16 %v2545, %v2544
    %v2632 = vpack.c.b16 %v2547, %v2546
    %v2633 = vpack.c.b16 %v2549, %v2548
    %v2634 = vpack.c.b16 %v2551, %v2550
    %v2635 = vpack.c.b16 %v2553, %v2552
    %v2636 = vpack.c.b16 %v2555, %v2554
    %v2637 = vpack.c.b16 %v2557, %v2556
    %v2638 = vpack.c.b16 %v2559, %v2558
    %v2639 = vpack.c.b16 %v2561, %v2560
    %v2640 = vpack.c.b16 %v2563, %v2562
    %v2641 = vpack.c.b16 %v2565, %v2564
    %v2642 = vpack.c.b16 %v2567, %v2566
    %v2643 = vpack.c.b16 %v2569, %v2568
    %v2644 = vpack.c.b16 %v2571, %v2570
    %v2645 = vpack.c.b16 %v2573, %v2572
    %v2646 = vpack.c.b16 %v2575, %v2574
    %v2647 = vpack.c.b16 %v2577, %v2576
    %v2648 = vpack.c.b16 %v2579, %v2578
    %v2649 = vpack.c.b16 %v2581, %v2580
    %v2650 = vpack.c.b16 %v2583, %v2582
    %v2651 = vpack.c.b16 %v2585, %v2584
    %v2652 = vpack.c.b16 %v2587, %v2586
    %v2653 = vpack.c.b16 %v2589, %v2588
    %2718 = vmatpush.bf16.msra.mxu0 %v2597
    %2719 = vmatpush.bf16.msra.mxu0 %v2596
    %2720 = vmatpush.bf16.msra.mxu0 %v2595
    %2721 = vmatpush.bf16.msra.mxu0 %v2594
    %2722 = vmatpush.bf16.msra.mxu0 %v2593
    %2723 = vmatpush.bf16.msra.mxu0 %v2592
    %2724 = vmatpush.bf16.msra.mxu0 %v2591
    %2725 = vmatpush.bf16.msra.mxu0 %v2590
    %2726 = vmatmul.bf16.gmra.mxu0 %v2194
    %v2727 = vpop.f32.mrf.mxu0
    %v2728 = vadd.f32 %v2332, %v2727
    %v2729 = vpop.f32.mrf.mxu0
    %2730 = vdwg.mxu0
    %2731 = vmatpush.bf16.msra.mxu0 %v2605
    %2732 = vmatpush.bf16.msra.mxu0 %v2604
    %2733 = vmatpush.bf16.msra.mxu0 %v2603
    %2734 = vmatpush.bf16.msra.mxu0 %v2602
    %2735 = vmatpush.bf16.msra.mxu0 %v2601
    %2736 = vmatpush.bf16.msra.mxu0 %v2600
    %2737 = vmatpush.bf16.msra.mxu0 %v2599
    %2738 = vmatpush.bf16.msra.mxu0 %v2598
    %2739 = vmatmul.bf16.gmra.mxu0 %v2195
    %v2740 = vpop.f32.mrf.mxu0
    %v2741 = vadd.f32 %v2728, %v2740
    %v2742 = vpop.f32.mrf.mxu0
    %2743 = vdwg.mxu0
    %2744 = vmatpush.bf16.msra.mxu0 %v2613
    %2745 = vmatpush.bf16.msra.mxu0 %v2612
    %2746 = vmatpush.bf16.msra.mxu0 %v2611
    %2747 = vmatpush.bf16.msra.mxu0 %v2610
    %2748 = vmatpush.bf16.msra.mxu0 %v2609
    %2749 = vmatpush.bf16.msra.mxu0 %v2608
    %2750 = vmatpush.bf16.msra.mxu0 %v2607
    %2751 = vmatpush.bf16.msra.mxu0 %v2606
    %2752 = vmatmul.bf16.gmra.mxu0 %v2196
    %v2753 = vpop.f32.mrf.mxu0
    %v2754 = vadd.f32 %v2741, %v2753
    %v2755 = vpop.f32.mrf.mxu0
    %2756 = vdwg.mxu0
    %2757 = vmatpush.bf16.msra.mxu0 %v2621
    %2758 = vmatpush.bf16.msra.mxu0 %v2620
    %2759 = vmatpush.bf16.msra.mxu0 %v2619
    %2760 = vmatpush.bf16.msra.mxu0 %v2618
    %2761 = vmatpush.bf16.msra.mxu0 %v2617
    %2762 = vmatpush.bf16.msra.mxu0 %v2616
    %2763 = vmatpush.bf16.msra.mxu0 %v2615
    %2764 = vmatpush.bf16.msra.mxu0 %v2614
    %2765 = vmatmul.bf16.gmra.mxu0 %v2197
    %v2766 = vpop.f32.mrf.mxu0
    %v2767 = vadd.f32 %v2754, %v2766
    %v2768 = vpop.f32.mrf.mxu0
    %2769 = vdwg.mxu0
    %2770 = vmatpush.bf16.msra.mxu0 %v2629
    %2771 = vmatpush.bf16.msra.mxu0 %v2628
    %2772 = vmatpush.bf16.msra.mxu0 %v2627
    %2773 = vmatpush.bf16.msra.mxu0 %v2626
    %2774 = vmatpush.bf16.msra.mxu0 %v2625
    %2775 = vmatpush.bf16.msra.mxu0 %v2624
    %2776 = vmatpush.bf16.msra.mxu0 %v2623
    %2777 = vmatpush.bf16.msra.mxu0 %v2622
    %2778 = vmatmul.bf16.gmra.mxu0 %v2198
    %v2779 = vpop.f32.mrf.mxu0
    %v2780 = vadd.f32 %v2767, %v2779
    %v2781 = vpop.f32.mrf.mxu0
    %2782 = vdwg.mxu0
    %2783 = vmatpush.bf16.msra.mxu0 %v2637
    %2784 = vmatpush.bf16.msra.mxu0 %v2636
    %2785 = vmatpush.bf16.msra.mxu0 %v2635
    %2786 = vmatpush.bf16.msra.mxu0 %v2634
    %2787 = vmatpush.bf16.msra.mxu0 %v2633
    %2788 = vmatpush.bf16.msra.mxu0 %v2632
    %2789 = vmatpush.bf16.msra.mxu0 %v2631
    %2790 = vmatpush.bf16.msra.mxu0 %v2630
    %2791 = vmatmul.bf16.gmra.mxu0 %v2199
    %v2792 = vpop.f32.mrf.mxu0
    %v2793 = vadd.f32 %v2780, %v2792
    %v2794 = vpop.f32.mrf.mxu0
    %2795 = vdwg.mxu0
    %2796 = vmatpush.bf16.msra.mxu0 %v2645
    %2797 = vmatpush.bf16.msra.mxu0 %v2644
    %2798 = vmatpush.bf16.msra.mxu0 %v2643
    %2799 = vmatpush.bf16.msra.mxu0 %v2642
    %2800 = vmatpush.bf16.msra.mxu0 %v2641
    %2801 = vmatpush.bf16.msra.mxu0 %v2640
    %2802 = vmatpush.bf16.msra.mxu0 %v2639
    %2803 = vmatpush.bf16.msra.mxu0 %v2638
    %2804 = vmatmul.bf16.gmra.mxu0 %v2200
    %v2805 = vpop.f32.mrf.mxu0
    %v2806 = vadd.f32 %v2793, %v2805
    %v2807 = vpop.f32.mrf.mxu0
    %2808 = vdwg.mxu0
    %2809 = vmatpush.bf16.msra.mxu0 %v2653
    %2810 = vmatpush.bf16.msra.mxu0 %v2652
    %2811 = vmatpush.bf16.msra.mxu0 %v2651
    %2812 = vmatpush.bf16.msra.mxu0 %v2650
    %2813 = vmatpush.bf16.msra.mxu0 %v2649
    %2814 = vmatpush.bf16.msra.mxu0 %v2648
    %2815 = vmatpush.bf16.msra.mxu0 %v2647
    %2816 = vmatpush.bf16.msra.mxu0 %v2646
    %2817 = vmatmul.bf16.gmra.mxu0 %v2201
    %v2818 = vpop.f32.mrf.mxu0
    %v2819 = vadd.f32 %v2806, %v2818
    %v2820 = vpop.f32.mrf.mxu0
    %2821 = vdwg.mxu0
    %2822 = vmax.xlane.f32.xlu0 %v2819
    %v2823 = vpop.xlane.xlu0 %2822
    %v2824 = vsub.f32 %v2819, %v2823
    %v2825 = vmul.f32 %v2824, 1.442695
    %v2826 = vpow.pop %v2825
    %2827 = vadd.xlane.f32.xlu0 %v2826
    %v2828 = vpop.xlane.xlu0 %2827
    %v2829 = vrcp.pop %v2828
    %v2830 = vmul.f32 %v2828, %v2829
    %v2831 = vsub.f32 1.0, %v2830
    %v2832 = vmul.f32 %v2829, %v2831
    %v2833 = vadd.f32 %v2829, %v2832
    %vm2834 = vweird.f32 %v2828
    %vm2835 = vweird.f32 %v2829
    %vm2836 = vmor %vm2834, %vm2835
    %v2837 = vsel %vm2836, %v2829, %v2833
    %v2838 = vand.u32 2147483647, %v2828
    %vm2839 = vcmp.eq.f32.partialorder %v2838, 8.507059e+37
    %v2840 = vand.u32 %v2828, 2147483648
    %v2841 = vor.u32 1.1754944e-38, %v2840
    %v2842 = vsel %vm2839, %v2841, %v2837
    %v2843 = vmul.f32 1.0, %v2842
    %v2844 = vmul.f32 %v2826, %v2843
    %2845 = vst [vmem:[#allocation13] sm:$0xff] %v2844
    // Predicated region
    $region54: #{tpu_custom_call.1} parent=1 // pred_check
      _
    $region55: #{tpu_custom_call.1} parent=1 // pred_check_branch
      %2847 = sbr.rel (0) target = $region57
    $region56: #{tpu_custom_call.1} parent=1 // pred_region
      %2849 = vsyncadd [#allocation4], 0
      %s2851 = sshll.u32 [#allocation13], 4
      %s2852 = int_to_ptr.vmem [resolvable:$true] %s2851
      %s2853 = sshll.u32 %s7, 4
      %s2854 = int_to_ptr.hbm [resolvable:$true] %s2853
      %2856 = dma.vmem_to_hbm [thread:$0]  %s2852, 128, %s2854, [#allocation4]
    $region57: #{tpu_custom_call.1} parent=1 // pred_fallthru
      _
    // Predicated region
    $region58: #{tpu_custom_call.1} parent=1 // pred_check
      _
    $region59: #{tpu_custom_call.1} parent=1 // pred_check_branch
      %2858 = sbr.rel (0) target = $region61
    $region60: #{tpu_custom_call.1} parent=1 // pred_region
      %2860 = dma.done [#allocation4], 128
    $region61: #{tpu_custom_call.1} parent=1 // pred_fallthru
      _
    %2861 = vsyncpa [#allocation3], 1
    %2862 = vsyncpa [#allocation6], 1
    %2863 = vsyncpa [#allocation9], 1
    %2864 = vsyncpa [#allocation12], 1
    %2865 = vsyncpa [#allocation4], 1

</llo_original>
